<compile_context>
chip_gen: v7x
topology: tpu7x:2x2x1
jax: 0.10.0
libtpu: 0.0.40
codegen_flags: <defaults>
</compile_context>

<pallas_src>
import functools

import jax
import jax.numpy as jnp
from jax.experimental import pallas as pl
from jax.experimental.pallas import tpu as pltpu

EPS = 1e-5

VGG16_CFG = [64, 64, "M", 128, 128, "M", 256, 256, 256, "M",
             512, 512, 512, "M", 512, 512, 512, "M"]


@functools.lru_cache(maxsize=None)
def _vmem_limit():
    """Scoped-VMEM limit clamped to the current generation (v7x has only 64 MiB)."""
    try:
        cap = int(pltpu.get_tpu_info().vmem_capacity_bytes)
        return min((cap * 3) // 4, 96 * 1024 * 1024)
    except Exception:  # pragma: no cover - conservative fallback, safe on v5e/v6e/v7x
        return 48 * 1024 * 1024


# ----------------------------------------------------------------------------
# Conv 3x3 (stride 1, padding 1) + folded BatchNorm + ReLU (+ fused vertical pool)
# ----------------------------------------------------------------------------
def _conv3x3_kernel(x_ref, w_ref, scale_ref, shift_ref, o_ref, y_ref, *,
                    TH, W, Wp, Cin, Cout, pool):
    # x_ref:   (Lp, Cin)      row-major flattened zero-padded image (whole image,
    #                         resident across the row-tile grid axis), bf16/f32
    # w_ref:   (9, Cin, Cout) taps, same dtype as x
    # scale/shift: (1, Cout)  folded eval-mode BatchNorm (f32)
    # o_ref:   (TH, W, Cout)  bf16, or (TH//2, W, Cout) when pool=True (rows max-
    #                         reduced 2:1; column 2:1 max is done by the wrapper)
    # y_ref:   (TH*Wp, Cout)  f32 VMEM scratch holding the raw conv accumulator
    t = pl.program_id(1)
    M = TH * Wp
    base = t * M                       # flat index of padded row t*TH

    acc = jnp.zeros((M, Cout), jnp.float32)
    for kh in range(3):                # fully unrolled: 9 taps per row block
        for kw in range(3):
            xs = x_ref[pl.ds(base + kh * Wp + kw, M), :]           # (M, Cin)
            if Cin == 1:
                # first layer: K would be tiny -> keep it on the VPU
                # (broadcast FMA), not a pathological K=1 MXU matmul.
                acc = acc + xs.astype(jnp.float32) * w_ref[kh * 3 + kw].astype(jnp.float32)
            else:
                acc = acc + jnp.dot(xs, w_ref[kh * 3 + kw],
                                    preferred_element_type=jnp.float32)
    y_ref[...] = acc                   # park the f32 accumulator in VMEM scratch

    scale = scale_ref[0]               # (Cout,) f32
    shift = shift_ref[0]

    def bn_relu(v):
        return jnp.maximum(v * scale + shift, 0.0)

    if pool:
        # vertical half of the fused 2x2 max-pool (valid W columns only)
        for i in range(TH // 2):
            r0 = bn_relu(y_ref[pl.ds((2 * i) * Wp, W), :])
            r1 = bn_relu(y_ref[pl.ds((2 * i + 1) * Wp, W), :])
            o_ref[i] = jnp.maximum(r0, r1).astype(o_ref.dtype)
    else:
        for i in range(TH):
            o_ref[i] = bn_relu(y_ref[pl.ds(i * Wp, W), :]).astype(o_ref.dtype)


def _pick_row_tile(H, Wp, *, pool, cap=280):
    # Largest divisor of H whose flattened row block keeps M = TH*Wp around the
    # 128-256 MXU sweet spot (and bounded register pressure); even when pooling.
    for th in range(H, 0, -1):
        if H % th:
            continue
        if pool and th % 2:
            continue
        if th * Wp <= cap:
            return th
    return H


def conv3x3_bn_relu(x, wt, scale, shift, *, pool):
    # x: (N, H, W, Cin) NHWC ; wt: (3, 3, Cin, Cout) HWIO. Returns bf16 NHWC,
    # already 2x2 max-pooled when pool=True.
    N, H, W, Cin = x.shape
    Cout = wt.shape[-1]
    Wp = W + 2
    cdt = jnp.float32 if Cin == 1 else jnp.bfloat16        # bf16 MXU operands

    xp = jnp.pad(x.astype(cdt), ((0, 0), (1, 1), (1, 1), (0, 0)))   # spatial pad=1
    # Flatten padded spatial dims row-major; +8 guard rows keep the last block's
    # (discarded) boundary taps in bounds.
    Lp = (H + 2) * Wp + 8
    xf = jnp.pad(xp.reshape(N, (H + 2) * Wp, Cin), ((0, 0), (0, 8), (0, 0)))
    wr = wt.reshape(9, Cin, Cout).astype(cdt)

    TH = _pick_row_tile(H, Wp, pool=pool)
    THo = TH // 2 if pool else TH
    Hout = H // 2 if pool else H

    kernel = functools.partial(_conv3x3_kernel, TH=TH, W=W, Wp=Wp,
                               Cin=Cin, Cout=Cout, pool=pool)
    out = pl.pallas_call(
        kernel,
        out_shape=jax.ShapeDtypeStruct((N, Hout, W, Cout), jnp.bfloat16),
        grid_spec=pltpu.PrefetchScalarGridSpec(
            num_scalar_prefetch=0,
            grid=(N, H // TH),
            in_specs=[
                pl.BlockSpec((None, Lp, Cin), lambda n, t: (n, 0, 0)),
                pl.BlockSpec((9, Cin, Cout), lambda n, t: (0, 0, 0)),
                pl.BlockSpec((1, Cout), lambda n, t: (0, 0)),
                pl.BlockSpec((1, Cout), lambda n, t: (0, 0)),
            ],
            out_specs=pl.BlockSpec((None, THo, W, Cout), lambda n, t: (n, t, 0, 0)),
            scratch_shapes=[pltpu.VMEM((TH * Wp, Cout), jnp.float32)],
        ),
        compiler_params=pltpu.CompilerParams(
            dimension_semantics=("parallel", "parallel"),
            vmem_limit_bytes=_vmem_limit(),
        ),
    )(xf, wr, scale.reshape(1, Cout).astype(jnp.float32),
      shift.reshape(1, Cout).astype(jnp.float32))

    if pool:
        # horizontal half of the 2x2 max-pool on the already height-halved tensor
        out = jnp.maximum(out[:, :, 0::2, :], out[:, :, 1::2, :])
    return out


# ----------------------------------------------------------------------------
# AdaptiveAvgPool2d((7, 7))
# ----------------------------------------------------------------------------
def _adaptive_avgpool7_kernel(x_ref, o_ref, *, S, C):
    x = x_ref[...]                                   # (S, S, C)
    if S == 1:
        o_ref[...] = jnp.broadcast_to(x[0, 0, :], (7, 7, C)).astype(o_ref.dtype)
    elif S == 7:
        o_ref[...] = x.astype(o_ref.dtype)
    else:
        xf = x.astype(jnp.float32)
        for i in range(7):                           # PyTorch adaptive-pool index rule
            h0 = (i * S) // 7
            h1 = -((-(i + 1) * S) // 7)
            for j in range(7):
                w0 = (j * S) // 7
                w1 = -((-(j + 1) * S) // 7)
                o_ref[i, j, :] = jnp.mean(xf[h0:h1, w0:w1, :],
                                          axis=(0, 1)).astype(o_ref.dtype)


def adaptive_avgpool7(x):
    N, S, S2, C = x.shape
    assert S == S2
    kernel = functools.partial(_adaptive_avgpool7_kernel, S=S, C=C)
    return pl.pallas_call(
        kernel,
        out_shape=jax.ShapeDtypeStruct((N, 7, 7, C), x.dtype),
        grid_spec=pltpu.PrefetchScalarGridSpec(
            num_scalar_prefetch=0,
            grid=(N,),
            in_specs=[pl.BlockSpec((None, S, S, C), lambda n: (n, 0, 0, 0))],
            out_specs=pl.BlockSpec((None, 7, 7, C), lambda n: (n, 0, 0, 0)),
        ),
        compiler_params=pltpu.CompilerParams(
            dimension_semantics=("parallel",),
            vmem_limit_bytes=_vmem_limit(),
        ),
    )(x)


# ----------------------------------------------------------------------------
# Linear (+ optional ReLU): K-tiled bf16 matmul with an f32 VMEM accumulator
# ----------------------------------------------------------------------------
def _linear_kernel(x_ref, w_ref, b_ref, o_ref, acc_ref, *, relu):
    k = pl.program_id(0)

    @pl.when(k == 0)
    def _():
        acc_ref[...] = jnp.zeros_like(acc_ref)

    acc_ref[...] += jnp.dot(x_ref[...], w_ref[...],
                            preferred_element_type=jnp.float32)

    @pl.when(k == pl.num_programs(0) - 1)
    def _():
        y = acc_ref[...] + b_ref[0]
        if relu:
            y = jnp.maximum(y, 0.0)
        o_ref[...] = y.astype(o_ref.dtype)


def _pick_tk(K, max_tk=4096):
    if K <= max_tk:
        return K
    for t in range(max_tk - max_tk % 128, 127, -128):   # largest 128-multiple divisor
        if K % t == 0:
            return t
    for t in range(max_tk, 0, -1):                      # any divisor <= cap (fallback)
        if K % t == 0:
            return t
    return K


def linear(x, wt, b, *, relu):
    # x: (N, K), wt: (K, F) stored bf16 (halves FC1 weight streaming), b: (F,) f32
    N, K = x.shape
    F = wt.shape[-1]
    x = x.astype(jnp.bfloat16)
    tk = _pick_tk(K)
    kernel = functools.partial(_linear_kernel, relu=relu)
    return pl.pallas_call(
        kernel,
        out_shape=jax.ShapeDtypeStruct((N, F), jnp.float32),
        grid_spec=pltpu.PrefetchScalarGridSpec(
            num_scalar_prefetch=0,
            grid=(K // tk,),
            in_specs=[
                pl.BlockSpec((N, tk), lambda k: (0, k)),
                pl.BlockSpec((tk, F), lambda k: (k, 0)),
                pl.BlockSpec((1, F), lambda k: (0, 0)),
            ],
            out_specs=pl.BlockSpec((N, F), lambda k: (0, 0)),
            scratch_shapes=[pltpu.VMEM((N, F), jnp.float32)],
        ),
        compiler_params=pltpu.CompilerParams(
            dimension_semantics=("arbitrary",),
            vmem_limit_bytes=_vmem_limit(),
        ),
    )(x, wt.astype(jnp.bfloat16), b.reshape(1, F).astype(jnp.float32))


# ----------------------------------------------------------------------------
# Parameters (deterministic synthetic init) and forward pass
# ----------------------------------------------------------------------------
def init_params(key, num_classes):
    feats = []
    cin = 1  # features[0] is replaced with Conv2d(1, 64, 3, 1, 1)
    for v in VGG16_CFG:
        if v == "M":
            feats.append(("M", None))
            continue
        key, kw, kb, kg, kbt, km, kv = jax.random.split(key, 7)
        fan_in = 9 * cin
        wt = jax.random.normal(kw, (3, 3, cin, v), jnp.float32) / jnp.sqrt(fan_in)
        b = 0.01 * jax.random.normal(kb, (v,), jnp.float32)
        gamma = 1.0 + 0.01 * jax.random.normal(kg, (v,), jnp.float32)
        beta = 0.01 * jax.random.normal(kbt, (v,), jnp.float32)
        rmean = 0.01 * jax.random.normal(km, (v,), jnp.float32)
        rvar = 1.0 + 0.1 * jnp.abs(jax.random.normal(kv, (v,), jnp.float32))
        scale = gamma / jnp.sqrt(rvar + EPS)           # fold eval-mode BN into conv
        shift = (b - rmean) * scale + beta
        wdt = jnp.float32 if cin == 1 else jnp.bfloat16  # MXU layers stream bf16 weights
        feats.append(("C", (wt.astype(wdt), scale, shift)))
        cin = v

    cls = []
    for din, dout in [(512 * 7 * 7, 512), (512, 128), (128, num_classes)]:
        key, kw, kb = jax.random.split(key, 3)
        wt = jax.random.normal(kw, (din, dout), jnp.float32) / jnp.sqrt(din)
        b = 0.01 * jax.random.normal(kb, (dout,), jnp.float32)
        cls.append((wt.astype(jnp.bfloat16), b))       # bf16 halves FC1's 51 MB stream
    return {"features": feats, "classifier": cls}


def vgg16_forward(params, x_nchw):
    x = jnp.transpose(x_nchw.astype(jnp.float32), (0, 2, 3, 1))  # NCHW -> NHWC
    feats = params["features"]
    i = 0
    while i < len(feats):
        kind, p = feats[i]
        assert kind == "C"
        wt, scale, shift = p
        pool = (i + 1 < len(feats)) and feats[i + 1][0] == "M"   # fuse MaxPool2d(2,2)
        x = conv3x3_bn_relu(x, wt, scale, shift, pool=pool)
        i += 2 if pool else 1
    x = adaptive_avgpool7(x)                                     # (N, 7, 7, 512) bf16
    N = x.shape[0]
    x = jnp.transpose(x, (0, 3, 1, 2)).reshape(N, -1)            # torch.flatten(x, 1) order
    (w1, b1), (w2, b2), (w3, b3) = params["classifier"]
    # nn.Dropout is identity at inference time (eval-mode semantics).
    x = linear(x, w1, b1, relu=True)
    x = linear(x, w2, b2, relu=True)
    x = linear(x, w3, b3, relu=False)
    return x


if __name__ == "__main__":
    num_classes = 10
    key = jax.random.PRNGKey(0)
    pkey, xkey = jax.random.split(key)
    params = init_params(pkey, num_classes)
    # PyTorch-style NCHW input, single channel (features[0] takes 1 input channel).
    # Spatial 32 -> 1x1 after the five 2x2 max-pools, then AdaptiveAvgPool2d -> 7x7.
    x = jax.random.normal(xkey, (2, 1, 32, 32), jnp.float32)
    out = vgg16_forward(params, x)
    out = jax.block_until_ready(out)
    assert out.shape == (2, num_classes), out.shape
    assert bool(jnp.all(jnp.isfinite(out)))
    print("KERNEL_OK")
</pallas_src>

<mosaic_0001>
module attributes {stable_mosaic.version = 11 : i64} {
  func.func @_conv3x3_kernel(%arg0: i32, %arg1: i32, %arg2: memref<1x1164x1xf32, #tpu.memory_space<vmem>>, %arg3: memref<9x1x64xf32, #tpu.memory_space<vmem>>, %arg4: memref<1x64xf32, #tpu.memory_space<vmem>>, %arg5: memref<1x64xf32, #tpu.memory_space<vmem>>, %arg6: memref<1x8x32x64xbf16, #tpu.memory_space<vmem>>, %arg7: memref<272x64xf32, #tpu.memory_space<vmem>>) attributes {dimension_semantics = [#tpu.dimension_semantics<parallel>, #tpu.dimension_semantics<parallel>], iteration_bounds = array<i64: 2, 4>, scalar_prefetch = 0 : i64, scratch_operands = 1 : i64, tpu.core_type = #tpu.core_type<tc>, window_params = [{transform_indices = @transform_0, window_bounds = array<i64: 1, 1164, 1>}, {pipeline_mode = #tpu.pipeline_mode<synchronous>, transform_indices = @transform_1, window_bounds = array<i64: 9, 1, 64>}, {pipeline_mode = #tpu.pipeline_mode<synchronous>, transform_indices = @transform_2, window_bounds = array<i64: 1, 64>}, {pipeline_mode = #tpu.pipeline_mode<synchronous>, transform_indices = @transform_3, window_bounds = array<i64: 1, 64>}, {transform_indices = @transform_4, window_bounds = array<i64: 1, 8, 32, 64>}]} {
    %c272_i32 = arith.constant 272 : i32
    %0 = arith.muli %arg1, %c272_i32 : i32
    %cst = arith.constant 0.000000e+00 : f32
    %1 = vector.broadcast %cst : f32 to vector<272x64xf32>
    %c0_i32 = arith.constant 0 : i32
    %2 = arith.addi %0, %c0_i32 : i32
    %c0_i32_0 = arith.constant 0 : i32
    %3 = arith.addi %2, %c0_i32_0 : i32
    %c0 = arith.constant 0 : index
    %4 = arith.index_cast %3 : i32 to index
    %c0_1 = arith.constant 0 : index
    %5 = vector.load %arg2[%c0, %4, %c0_1] : memref<1x1164x1xf32, #tpu.memory_space<vmem>>, vector<1x272x1xf32>
    %6 = vector.shape_cast %5 : vector<1x272x1xf32> to vector<272x1xf32>
    %c0_2 = arith.constant 0 : index
    %c0_3 = arith.constant 0 : index
    %c0_4 = arith.constant 0 : index
    %7 = vector.load %arg3[%c0_2, %c0_3, %c0_4] : memref<9x1x64xf32, #tpu.memory_space<vmem>>, vector<1x1x64xf32>
    %8 = vector.shape_cast %7 : vector<1x1x64xf32> to vector<1x64xf32>
    %9 = vector.broadcast %6 : vector<272x1xf32> to vector<272x64xf32>
    %10 = vector.broadcast %8 : vector<1x64xf32> to vector<272x64xf32>
    %11 = arith.mulf %9, %10 : vector<272x64xf32>
    %12 = arith.addf %1, %11 : vector<272x64xf32>
    %c0_i32_5 = arith.constant 0 : i32
    %13 = arith.addi %0, %c0_i32_5 : i32
    %c1_i32 = arith.constant 1 : i32
    %14 = arith.addi %13, %c1_i32 : i32
    %c0_6 = arith.constant 0 : index
    %15 = arith.index_cast %14 : i32 to index
    %c0_7 = arith.constant 0 : index
    %16 = vector.load %arg2[%c0_6, %15, %c0_7] : memref<1x1164x1xf32, #tpu.memory_space<vmem>>, vector<1x272x1xf32>
    %17 = vector.shape_cast %16 : vector<1x272x1xf32> to vector<272x1xf32>
    %c1 = arith.constant 1 : index
    %c0_8 = arith.constant 0 : index
    %c0_9 = arith.constant 0 : index
    %18 = vector.load %arg3[%c1, %c0_8, %c0_9] : memref<9x1x64xf32, #tpu.memory_space<vmem>>, vector<1x1x64xf32>
    %19 = vector.shape_cast %18 : vector<1x1x64xf32> to vector<1x64xf32>
    %20 = vector.broadcast %17 : vector<272x1xf32> to vector<272x64xf32>
    %21 = vector.broadcast %19 : vector<1x64xf32> to vector<272x64xf32>
    %22 = arith.mulf %20, %21 : vector<272x64xf32>
    %23 = arith.addf %12, %22 : vector<272x64xf32>
    %c0_i32_10 = arith.constant 0 : i32
    %24 = arith.addi %0, %c0_i32_10 : i32
    %c2_i32 = arith.constant 2 : i32
    %25 = arith.addi %24, %c2_i32 : i32
    %c0_11 = arith.constant 0 : index
    %26 = arith.index_cast %25 : i32 to index
    %c0_12 = arith.constant 0 : index
    %27 = vector.load %arg2[%c0_11, %26, %c0_12] : memref<1x1164x1xf32, #tpu.memory_space<vmem>>, vector<1x272x1xf32>
    %28 = vector.shape_cast %27 : vector<1x272x1xf32> to vector<272x1xf32>
    %c2 = arith.constant 2 : index
    %c0_13 = arith.constant 0 : index
    %c0_14 = arith.constant 0 : index
    %29 = vector.load %arg3[%c2, %c0_13, %c0_14] : memref<9x1x64xf32, #tpu.memory_space<vmem>>, vector<1x1x64xf32>
    %30 = vector.shape_cast %29 : vector<1x1x64xf32> to vector<1x64xf32>
    %31 = vector.broadcast %28 : vector<272x1xf32> to vector<272x64xf32>
    %32 = vector.broadcast %30 : vector<1x64xf32> to vector<272x64xf32>
    %33 = arith.mulf %31, %32 : vector<272x64xf32>
    %34 = arith.addf %23, %33 : vector<272x64xf32>
    %c34_i32 = arith.constant 34 : i32
    %35 = arith.addi %0, %c34_i32 : i32
    %c0_i32_15 = arith.constant 0 : i32
    %36 = arith.addi %35, %c0_i32_15 : i32
    %c0_16 = arith.constant 0 : index
    %37 = arith.index_cast %36 : i32 to index
    %c0_17 = arith.constant 0 : index
    %38 = vector.load %arg2[%c0_16, %37, %c0_17] : memref<1x1164x1xf32, #tpu.memory_space<vmem>>, vector<1x272x1xf32>
    %39 = vector.shape_cast %38 : vector<1x272x1xf32> to vector<272x1xf32>
    %c3 = arith.constant 3 : index
    %c0_18 = arith.constant 0 : index
    %c0_19 = arith.constant 0 : index
    %40 = vector.load %arg3[%c3, %c0_18, %c0_19] : memref<9x1x64xf32, #tpu.memory_space<vmem>>, vector<1x1x64xf32>
    %41 = vector.shape_cast %40 : vector<1x1x64xf32> to vector<1x64xf32>
    %42 = vector.broadcast %39 : vector<272x1xf32> to vector<272x64xf32>
    %43 = vector.broadcast %41 : vector<1x64xf32> to vector<272x64xf32>
    %44 = arith.mulf %42, %43 : vector<272x64xf32>
    %45 = arith.addf %34, %44 : vector<272x64xf32>
    %c34_i32_20 = arith.constant 34 : i32
    %46 = arith.addi %0, %c34_i32_20 : i32
    %c1_i32_21 = arith.constant 1 : i32
    %47 = arith.addi %46, %c1_i32_21 : i32
    %c0_22 = arith.constant 0 : index
    %48 = arith.index_cast %47 : i32 to index
    %c0_23 = arith.constant 0 : index
    %49 = vector.load %arg2[%c0_22, %48, %c0_23] : memref<1x1164x1xf32, #tpu.memory_space<vmem>>, vector<1x272x1xf32>
    %50 = vector.shape_cast %49 : vector<1x272x1xf32> to vector<272x1xf32>
    %c4 = arith.constant 4 : index
    %c0_24 = arith.constant 0 : index
    %c0_25 = arith.constant 0 : index
    %51 = vector.load %arg3[%c4, %c0_24, %c0_25] : memref<9x1x64xf32, #tpu.memory_space<vmem>>, vector<1x1x64xf32>
    %52 = vector.shape_cast %51 : vector<1x1x64xf32> to vector<1x64xf32>
    %53 = vector.broadcast %50 : vector<272x1xf32> to vector<272x64xf32>
    %54 = vector.broadcast %52 : vector<1x64xf32> to vector<272x64xf32>
    %55 = arith.mulf %53, %54 : vector<272x64xf32>
    %56 = arith.addf %45, %55 : vector<272x64xf32>
    %c34_i32_26 = arith.constant 34 : i32
    %57 = arith.addi %0, %c34_i32_26 : i32
    %c2_i32_27 = arith.constant 2 : i32
    %58 = arith.addi %57, %c2_i32_27 : i32
    %c0_28 = arith.constant 0 : index
    %59 = arith.index_cast %58 : i32 to index
    %c0_29 = arith.constant 0 : index
    %60 = vector.load %arg2[%c0_28, %59, %c0_29] : memref<1x1164x1xf32, #tpu.memory_space<vmem>>, vector<1x272x1xf32>
    %61 = vector.shape_cast %60 : vector<1x272x1xf32> to vector<272x1xf32>
    %c5 = arith.constant 5 : index
    %c0_30 = arith.constant 0 : index
    %c0_31 = arith.constant 0 : index
    %62 = vector.load %arg3[%c5, %c0_30, %c0_31] : memref<9x1x64xf32, #tpu.memory_space<vmem>>, vector<1x1x64xf32>
    %63 = vector.shape_cast %62 : vector<1x1x64xf32> to vector<1x64xf32>
    %64 = vector.broadcast %61 : vector<272x1xf32> to vector<272x64xf32>
    %65 = vector.broadcast %63 : vector<1x64xf32> to vector<272x64xf32>
    %66 = arith.mulf %64, %65 : vector<272x64xf32>
    %67 = arith.addf %56, %66 : vector<272x64xf32>
    %c68_i32 = arith.constant 68 : i32
    %68 = arith.addi %0, %c68_i32 : i32
    %c0_i32_32 = arith.constant 0 : i32
    %69 = arith.addi %68, %c0_i32_32 : i32
    %c0_33 = arith.constant 0 : index
    %70 = arith.index_cast %69 : i32 to index
    %c0_34 = arith.constant 0 : index
    %71 = vector.load %arg2[%c0_33, %70, %c0_34] : memref<1x1164x1xf32, #tpu.memory_space<vmem>>, vector<1x272x1xf32>
    %72 = vector.shape_cast %71 : vector<1x272x1xf32> to vector<272x1xf32>
    %c6 = arith.constant 6 : index
    %c0_35 = arith.constant 0 : index
    %c0_36 = arith.constant 0 : index
    %73 = vector.load %arg3[%c6, %c0_35, %c0_36] : memref<9x1x64xf32, #tpu.memory_space<vmem>>, vector<1x1x64xf32>
    %74 = vector.shape_cast %73 : vector<1x1x64xf32> to vector<1x64xf32>
    %75 = vector.broadcast %72 : vector<272x1xf32> to vector<272x64xf32>
    %76 = vector.broadcast %74 : vector<1x64xf32> to vector<272x64xf32>
    %77 = arith.mulf %75, %76 : vector<272x64xf32>
    %78 = arith.addf %67, %77 : vector<272x64xf32>
    %c68_i32_37 = arith.constant 68 : i32
    %79 = arith.addi %0, %c68_i32_37 : i32
    %c1_i32_38 = arith.constant 1 : i32
    %80 = arith.addi %79, %c1_i32_38 : i32
    %c0_39 = arith.constant 0 : index
    %81 = arith.index_cast %80 : i32 to index
    %c0_40 = arith.constant 0 : index
    %82 = vector.load %arg2[%c0_39, %81, %c0_40] : memref<1x1164x1xf32, #tpu.memory_space<vmem>>, vector<1x272x1xf32>
    %83 = vector.shape_cast %82 : vector<1x272x1xf32> to vector<272x1xf32>
    %c7 = arith.constant 7 : index
    %c0_41 = arith.constant 0 : index
    %c0_42 = arith.constant 0 : index
    %84 = vector.load %arg3[%c7, %c0_41, %c0_42] : memref<9x1x64xf32, #tpu.memory_space<vmem>>, vector<1x1x64xf32>
    %85 = vector.shape_cast %84 : vector<1x1x64xf32> to vector<1x64xf32>
    %86 = vector.broadcast %83 : vector<272x1xf32> to vector<272x64xf32>
    %87 = vector.broadcast %85 : vector<1x64xf32> to vector<272x64xf32>
    %88 = arith.mulf %86, %87 : vector<272x64xf32>
    %89 = arith.addf %78, %88 : vector<272x64xf32>
    %c68_i32_43 = arith.constant 68 : i32
    %90 = arith.addi %0, %c68_i32_43 : i32
    %c2_i32_44 = arith.constant 2 : i32
    %91 = arith.addi %90, %c2_i32_44 : i32
    %c0_45 = arith.constant 0 : index
    %92 = arith.index_cast %91 : i32 to index
    %c0_46 = arith.constant 0 : index
    %93 = vector.load %arg2[%c0_45, %92, %c0_46] : memref<1x1164x1xf32, #tpu.memory_space<vmem>>, vector<1x272x1xf32>
    %94 = vector.shape_cast %93 : vector<1x272x1xf32> to vector<272x1xf32>
    %c8 = arith.constant 8 : index
    %c0_47 = arith.constant 0 : index
    %c0_48 = arith.constant 0 : index
    %95 = vector.load %arg3[%c8, %c0_47, %c0_48] : memref<9x1x64xf32, #tpu.memory_space<vmem>>, vector<1x1x64xf32>
    %96 = vector.shape_cast %95 : vector<1x1x64xf32> to vector<1x64xf32>
    %97 = vector.broadcast %94 : vector<272x1xf32> to vector<272x64xf32>
    %98 = vector.broadcast %96 : vector<1x64xf32> to vector<272x64xf32>
    %99 = arith.mulf %97, %98 : vector<272x64xf32>
    %100 = arith.addf %89, %99 : vector<272x64xf32>
    %c0_49 = arith.constant 0 : index
    %c0_50 = arith.constant 0 : index
    %101 = vector.load %arg7[%c0_49, %c0_50] : memref<272x64xf32, #tpu.memory_space<vmem>>, vector<272x64xf32>
    tpu.vector_store %arg7[%c0_49, %c0_50], %100 {strides = array<i32>} : memref<272x64xf32, #tpu.memory_space<vmem>>, vector<272x64xf32>,
    %c0_51 = arith.constant 0 : index
    %c0_52 = arith.constant 0 : index
    %102 = vector.load %arg4[%c0_51, %c0_52] : memref<1x64xf32, #tpu.memory_space<vmem>>, vector<1x64xf32>
    %103 = vector.shape_cast %102 : vector<1x64xf32> to vector<64xf32>
    %c0_53 = arith.constant 0 : index
    %c0_54 = arith.constant 0 : index
    %104 = vector.load %arg5[%c0_53, %c0_54] : memref<1x64xf32, #tpu.memory_space<vmem>>, vector<1x64xf32>
    %105 = vector.shape_cast %104 : vector<1x64xf32> to vector<64xf32>
    %c0_55 = arith.constant 0 : index
    %c0_56 = arith.constant 0 : index
    %106 = vector.load %arg7[%c0_55, %c0_56] : memref<272x64xf32, #tpu.memory_space<vmem>>, vector<32x64xf32>
    %107 = vector.shape_cast %103 : vector<64xf32> to vector<1x64xf32>
    %108 = vector.broadcast %107 : vector<1x64xf32> to vector<32x64xf32>
    %109 = arith.mulf %106, %108 : vector<32x64xf32>
    %110 = vector.shape_cast %105 : vector<64xf32> to vector<1x64xf32>
    %111 = vector.broadcast %110 : vector<1x64xf32> to vector<32x64xf32>
    %112 = arith.addf %109, %111 : vector<32x64xf32>
    %cst_57 = arith.constant 0.000000e+00 : f32
    %113 = vector.broadcast %cst_57 : f32 to vector<32x64xf32>
    %114 = arith.maximumf %112, %113 : vector<32x64xf32>
    %115 = arith.truncf %114 : vector<32x64xf32> to vector<32x64xbf16>
    %c0_58 = arith.constant 0 : index
    %c0_59 = arith.constant 0 : index
    %c0_60 = arith.constant 0 : index
    %c0_61 = arith.constant 0 : index
    %116 = vector.load %arg6[%c0_58, %c0_59, %c0_60, %c0_61] : memref<1x8x32x64xbf16, #tpu.memory_space<vmem>>, vector<1x1x32x64xbf16>
    %117 = vector.shape_cast %116 : vector<1x1x32x64xbf16> to vector<32x64xbf16>
    %118 = vector.shape_cast %115 : vector<32x64xbf16> to vector<1x1x32x64xbf16>
    tpu.vector_store %arg6[%c0_58, %c0_59, %c0_60, %c0_61], %118 {strides = array<i32>} : memref<1x8x32x64xbf16, #tpu.memory_space<vmem>>, vector<1x1x32x64xbf16>,
    %c34 = arith.constant 34 : index
    %c0_62 = arith.constant 0 : index
    %119 = vector.load %arg7[%c34, %c0_62] : memref<272x64xf32, #tpu.memory_space<vmem>>, vector<32x64xf32>
    %120 = vector.shape_cast %103 : vector<64xf32> to vector<1x64xf32>
    %121 = vector.broadcast %120 : vector<1x64xf32> to vector<32x64xf32>
    %122 = arith.mulf %119, %121 : vector<32x64xf32>
    %123 = vector.shape_cast %105 : vector<64xf32> to vector<1x64xf32>
    %124 = vector.broadcast %123 : vector<1x64xf32> to vector<32x64xf32>
    %125 = arith.addf %122, %124 : vector<32x64xf32>
    %cst_63 = arith.constant 0.000000e+00 : f32
    %126 = vector.broadcast %cst_63 : f32 to vector<32x64xf32>
    %127 = arith.maximumf %125, %126 : vector<32x64xf32>
    %128 = arith.truncf %127 : vector<32x64xf32> to vector<32x64xbf16>
    %c0_64 = arith.constant 0 : index
    %c1_65 = arith.constant 1 : index
    %c0_66 = arith.constant 0 : index
    %c0_67 = arith.constant 0 : index
    %129 = vector.load %arg6[%c0_64, %c1_65, %c0_66, %c0_67] : memref<1x8x32x64xbf16, #tpu.memory_space<vmem>>, vector<1x1x32x64xbf16>
    %130 = vector.shape_cast %129 : vector<1x1x32x64xbf16> to vector<32x64xbf16>
    %131 = vector.shape_cast %128 : vector<32x64xbf16> to vector<1x1x32x64xbf16>
    tpu.vector_store %arg6[%c0_64, %c1_65, %c0_66, %c0_67], %131 {strides = array<i32>} : memref<1x8x32x64xbf16, #tpu.memory_space<vmem>>, vector<1x1x32x64xbf16>,
    %c68 = arith.constant 68 : index
    %c0_68 = arith.constant 0 : index
    %132 = vector.load %arg7[%c68, %c0_68] : memref<272x64xf32, #tpu.memory_space<vmem>>, vector<32x64xf32>
    %133 = vector.shape_cast %103 : vector<64xf32> to vector<1x64xf32>
    %134 = vector.broadcast %133 : vector<1x64xf32> to vector<32x64xf32>
    %135 = arith.mulf %132, %134 : vector<32x64xf32>
    %136 = vector.shape_cast %105 : vector<64xf32> to vector<1x64xf32>
    %137 = vector.broadcast %136 : vector<1x64xf32> to vector<32x64xf32>
    %138 = arith.addf %135, %137 : vector<32x64xf32>
    %cst_69 = arith.constant 0.000000e+00 : f32
    %139 = vector.broadcast %cst_69 : f32 to vector<32x64xf32>
    %140 = arith.maximumf %138, %139 : vector<32x64xf32>
    %141 = arith.truncf %140 : vector<32x64xf32> to vector<32x64xbf16>
    %c0_70 = arith.constant 0 : index
    %c2_71 = arith.constant 2 : index
    %c0_72 = arith.constant 0 : index
    %c0_73 = arith.constant 0 : index
    %142 = vector.load %arg6[%c0_70, %c2_71, %c0_72, %c0_73] : memref<1x8x32x64xbf16, #tpu.memory_space<vmem>>, vector<1x1x32x64xbf16>
    %143 = vector.shape_cast %142 : vector<1x1x32x64xbf16> to vector<32x64xbf16>
    %144 = vector.shape_cast %141 : vector<32x64xbf16> to vector<1x1x32x64xbf16>
    tpu.vector_store %arg6[%c0_70, %c2_71, %c0_72, %c0_73], %144 {strides = array<i32>} : memref<1x8x32x64xbf16, #tpu.memory_space<vmem>>, vector<1x1x32x64xbf16>,
    %c102 = arith.constant 102 : index
    %c0_74 = arith.constant 0 : index
    %145 = vector.load %arg7[%c102, %c0_74] : memref<272x64xf32, #tpu.memory_space<vmem>>, vector<32x64xf32>
    %146 = vector.shape_cast %103 : vector<64xf32> to vector<1x64xf32>
    %147 = vector.broadcast %146 : vector<1x64xf32> to vector<32x64xf32>
    %148 = arith.mulf %145, %147 : vector<32x64xf32>
    %149 = vector.shape_cast %105 : vector<64xf32> to vector<1x64xf32>
    %150 = vector.broadcast %149 : vector<1x64xf32> to vector<32x64xf32>
    %151 = arith.addf %148, %150 : vector<32x64xf32>
    %cst_75 = arith.constant 0.000000e+00 : f32
    %152 = vector.broadcast %cst_75 : f32 to vector<32x64xf32>
    %153 = arith.maximumf %151, %152 : vector<32x64xf32>
    %154 = arith.truncf %153 : vector<32x64xf32> to vector<32x64xbf16>
    %c0_76 = arith.constant 0 : index
    %c3_77 = arith.constant 3 : index
    %c0_78 = arith.constant 0 : index
    %c0_79 = arith.constant 0 : index
    %155 = vector.load %arg6[%c0_76, %c3_77, %c0_78, %c0_79] : memref<1x8x32x64xbf16, #tpu.memory_space<vmem>>, vector<1x1x32x64xbf16>
    %156 = vector.shape_cast %155 : vector<1x1x32x64xbf16> to vector<32x64xbf16>
    %157 = vector.shape_cast %154 : vector<32x64xbf16> to vector<1x1x32x64xbf16>
    tpu.vector_store %arg6[%c0_76, %c3_77, %c0_78, %c0_79], %157 {strides = array<i32>} : memref<1x8x32x64xbf16, #tpu.memory_space<vmem>>, vector<1x1x32x64xbf16>,
    %c136 = arith.constant 136 : index
    %c0_80 = arith.constant 0 : index
    %158 = vector.load %arg7[%c136, %c0_80] : memref<272x64xf32, #tpu.memory_space<vmem>>, vector<32x64xf32>
    %159 = vector.shape_cast %103 : vector<64xf32> to vector<1x64xf32>
    %160 = vector.broadcast %159 : vector<1x64xf32> to vector<32x64xf32>
    %161 = arith.mulf %158, %160 : vector<32x64xf32>
    %162 = vector.shape_cast %105 : vector<64xf32> to vector<1x64xf32>
    %163 = vector.broadcast %162 : vector<1x64xf32> to vector<32x64xf32>
    %164 = arith.addf %161, %163 : vector<32x64xf32>
    %cst_81 = arith.constant 0.000000e+00 : f32
    %165 = vector.broadcast %cst_81 : f32 to vector<32x64xf32>
    %166 = arith.maximumf %164, %165 : vector<32x64xf32>
    %167 = arith.truncf %166 : vector<32x64xf32> to vector<32x64xbf16>
    %c0_82 = arith.constant 0 : index
    %c4_83 = arith.constant 4 : index
    %c0_84 = arith.constant 0 : index
    %c0_85 = arith.constant 0 : index
    %168 = vector.load %arg6[%c0_82, %c4_83, %c0_84, %c0_85] : memref<1x8x32x64xbf16, #tpu.memory_space<vmem>>, vector<1x1x32x64xbf16>
    %169 = vector.shape_cast %168 : vector<1x1x32x64xbf16> to vector<32x64xbf16>
    %170 = vector.shape_cast %167 : vector<32x64xbf16> to vector<1x1x32x64xbf16>
    tpu.vector_store %arg6[%c0_82, %c4_83, %c0_84, %c0_85], %170 {strides = array<i32>} : memref<1x8x32x64xbf16, #tpu.memory_space<vmem>>, vector<1x1x32x64xbf16>,
    %c170 = arith.constant 170 : index
    %c0_86 = arith.constant 0 : index
    %171 = vector.load %arg7[%c170, %c0_86] : memref<272x64xf32, #tpu.memory_space<vmem>>, vector<32x64xf32>
    %172 = vector.shape_cast %103 : vector<64xf32> to vector<1x64xf32>
    %173 = vector.broadcast %172 : vector<1x64xf32> to vector<32x64xf32>
    %174 = arith.mulf %171, %173 : vector<32x64xf32>
    %175 = vector.shape_cast %105 : vector<64xf32> to vector<1x64xf32>
    %176 = vector.broadcast %175 : vector<1x64xf32> to vector<32x64xf32>
    %177 = arith.addf %174, %176 : vector<32x64xf32>
    %cst_87 = arith.constant 0.000000e+00 : f32
    %178 = vector.broadcast %cst_87 : f32 to vector<32x64xf32>
    %179 = arith.maximumf %177, %178 : vector<32x64xf32>
    %180 = arith.truncf %179 : vector<32x64xf32> to vector<32x64xbf16>
    %c0_88 = arith.constant 0 : index
    %c5_89 = arith.constant 5 : index
    %c0_90 = arith.constant 0 : index
    %c0_91 = arith.constant 0 : index
    %181 = vector.load %arg6[%c0_88, %c5_89, %c0_90, %c0_91] : memref<1x8x32x64xbf16, #tpu.memory_space<vmem>>, vector<1x1x32x64xbf16>
    %182 = vector.shape_cast %181 : vector<1x1x32x64xbf16> to vector<32x64xbf16>
    %183 = vector.shape_cast %180 : vector<32x64xbf16> to vector<1x1x32x64xbf16>
    tpu.vector_store %arg6[%c0_88, %c5_89, %c0_90, %c0_91], %183 {strides = array<i32>} : memref<1x8x32x64xbf16, #tpu.memory_space<vmem>>, vector<1x1x32x64xbf16>,
    %c204 = arith.constant 204 : index
    %c0_92 = arith.constant 0 : index
    %184 = vector.load %arg7[%c204, %c0_92] : memref<272x64xf32, #tpu.memory_space<vmem>>, vector<32x64xf32>
    %185 = vector.shape_cast %103 : vector<64xf32> to vector<1x64xf32>
    %186 = vector.broadcast %185 : vector<1x64xf32> to vector<32x64xf32>
    %187 = arith.mulf %184, %186 : vector<32x64xf32>
    %188 = vector.shape_cast %105 : vector<64xf32> to vector<1x64xf32>
    %189 = vector.broadcast %188 : vector<1x64xf32> to vector<32x64xf32>
    %190 = arith.addf %187, %189 : vector<32x64xf32>
    %cst_93 = arith.constant 0.000000e+00 : f32
    %191 = vector.broadcast %cst_93 : f32 to vector<32x64xf32>
    %192 = arith.maximumf %190, %191 : vector<32x64xf32>
    %193 = arith.truncf %192 : vector<32x64xf32> to vector<32x64xbf16>
    %c0_94 = arith.constant 0 : index
    %c6_95 = arith.constant 6 : index
    %c0_96 = arith.constant 0 : index
    %c0_97 = arith.constant 0 : index
    %194 = vector.load %arg6[%c0_94, %c6_95, %c0_96, %c0_97] : memref<1x8x32x64xbf16, #tpu.memory_space<vmem>>, vector<1x1x32x64xbf16>
    %195 = vector.shape_cast %194 : vector<1x1x32x64xbf16> to vector<32x64xbf16>
    %196 = vector.shape_cast %193 : vector<32x64xbf16> to vector<1x1x32x64xbf16>
    tpu.vector_store %arg6[%c0_94, %c6_95, %c0_96, %c0_97], %196 {strides = array<i32>} : memref<1x8x32x64xbf16, #tpu.memory_space<vmem>>, vector<1x1x32x64xbf16>,
    %c238 = arith.constant 238 : index
    %c0_98 = arith.constant 0 : index
    %197 = vector.load %arg7[%c238, %c0_98] : memref<272x64xf32, #tpu.memory_space<vmem>>, vector<32x64xf32>
    %198 = vector.shape_cast %103 : vector<64xf32> to vector<1x64xf32>
    %199 = vector.broadcast %198 : vector<1x64xf32> to vector<32x64xf32>
    %200 = arith.mulf %197, %199 : vector<32x64xf32>
    %201 = vector.shape_cast %105 : vector<64xf32> to vector<1x64xf32>
    %202 = vector.broadcast %201 : vector<1x64xf32> to vector<32x64xf32>
    %203 = arith.addf %200, %202 : vector<32x64xf32>
    %cst_99 = arith.constant 0.000000e+00 : f32
    %204 = vector.broadcast %cst_99 : f32 to vector<32x64xf32>
    %205 = arith.maximumf %203, %204 : vector<32x64xf32>
    %206 = arith.truncf %205 : vector<32x64xf32> to vector<32x64xbf16>
    %c0_100 = arith.constant 0 : index
    %c7_101 = arith.constant 7 : index
    %c0_102 = arith.constant 0 : index
    %c0_103 = arith.constant 0 : index
    %207 = vector.load %arg6[%c0_100, %c7_101, %c0_102, %c0_103] : memref<1x8x32x64xbf16, #tpu.memory_space<vmem>>, vector<1x1x32x64xbf16>
    %208 = vector.shape_cast %207 : vector<1x1x32x64xbf16> to vector<32x64xbf16>
    %209 = vector.shape_cast %206 : vector<32x64xbf16> to vector<1x1x32x64xbf16>
    tpu.vector_store %arg6[%c0_100, %c7_101, %c0_102, %c0_103], %209 {strides = array<i32>} : memref<1x8x32x64xbf16, #tpu.memory_space<vmem>>, vector<1x1x32x64xbf16>,
    return
  }
  func.func @transform_0(%arg0: i32, %arg1: i32) -> (i32, i32, i32) {
    %c0_i32 = arith.constant 0 : i32
    %c0_i32_0 = arith.constant 0 : i32
    %c0_i32_1 = arith.constant 0 : i32
    return %arg0, %c0_i32, %c0_i32_0 : i32, i32, i32
  }
  func.func @transform_1(%arg0: i32, %arg1: i32) -> (i32, i32, i32) {
    %c0_i32 = arith.constant 0 : i32
    %c0_i32_0 = arith.constant 0 : i32
    %c0_i32_1 = arith.constant 0 : i32
    %c0_i32_2 = arith.constant 0 : i32
    return %c0_i32, %c0_i32_0, %c0_i32_1 : i32, i32, i32
  }
  func.func @transform_2(%arg0: i32, %arg1: i32) -> (i32, i32) {
    %c0_i32 = arith.constant 0 : i32
    %c0_i32_0 = arith.constant 0 : i32
    %c0_i32_1 = arith.constant 0 : i32
    return %c0_i32, %c0_i32_0 : i32, i32
  }
  func.func @transform_3(%arg0: i32, %arg1: i32) -> (i32, i32) {
    %c0_i32 = arith.constant 0 : i32
    %c0_i32_0 = arith.constant 0 : i32
    %c0_i32_1 = arith.constant 0 : i32
    return %c0_i32, %c0_i32_0 : i32, i32
  }
  func.func @transform_4(%arg0: i32, %arg1: i32) -> (i32, i32, i32, i32) {
    %c0_i32 = arith.constant 0 : i32
    %c0_i32_0 = arith.constant 0 : i32
    %c0_i32_1 = arith.constant 0 : i32
    return %arg0, %arg1, %c0_i32, %c0_i32_0 : i32, i32, i32, i32
  }
}

</mosaic_0001>

<llo_original>
// kernel: tpu_custom_call.1
$region0: #{tpu_custom_call.1}
  #allocation0 [shape = 'u32[]', space=smem, size = 0x4, offset = 0x4, fixed_abs, tag = 'smem constant byte address 0x4 - core index']
  #allocation1 [shape = 'u32[144,128]{1,0:T(1,128)}', space=vmem, size = 0x12000, scoped, tag = 'internal scratch']
  #allocation2 [shape = 'f32[272,64]{1,0:T(8,128)}', space=vmem, size = 0x22000, scoped, tag = 'scratch operand']
  %s0 = inlined_call_operand.vmem [shape: f32[2,1164,1], index: 0, kind: input, shape index: {}]
  %s1 = inlined_call_operand.vmem [shape: f32[9,1,64], index: 1, kind: input, shape index: {}]
  %s2 = inlined_call_operand.vmem [shape: f32[1,64], index: 2, kind: input, shape index: {}]
  %s3 = inlined_call_operand.vmem [shape: f32[1,64], index: 3, kind: input, shape index: {}]
  %s4 = inlined_call_operand.hbm [shape: bf16[2,32,32,64], index: 4, kind: output, shape index: {}]
  %s5 = sld [smem:[#allocation0]]
  $region49: #{tpu_custom_call.1} parent=0
    _
  %s7 = ssub.s32 1, %s5
  %s8 = scalar_select 0, %s7, %s5
  $region1: #{tpu_custom_call.1} parent=0
    #allocation3 [shape = 'u8[131072]{0}', space=vmem, size = 0x20000, scoped, tag = 'output window, operand 0']
    #allocation4 [shape = 's32[2]{0}', space=sflag, size = 0x8, scoped, tag = 'scoped memory for tpu_custom_call.1']
    %9 = vsyncpa [#allocation4], 0
    %s10 = scalar_lea.sflag [#allocation4], 1
    %11 = vsyncpa %s10, 0
    loop: start=0, step=1, limit=10
    $region2: #{tpu_custom_call.1} parent=1 // loop_pre_header
      _
    $region3: #{tpu_custom_call.1} parent=1 // loop_header
      %s13 = sphi 0, %s17
      %p14 = scmp.ge.s32.totalorder %s13, 10
      %s20 = sphi 0, %s32
      %s21 = sphi 0, %s28
      %s22 = sphi 0, %s20
      %s23 = sphi 0, %s21
      %s24 = sphi 0, %s22
      %s25 = sphi 0, %s23
      %s35 = sphi 0, %s37
      %s38 = sphi 0, %s35
      %s39 = sphi 0, %s38
      %s55 = sphi 0, %s39
      %s59 = sphi 0, %s59
      %s61 = sphi 0, %s59
      %s62 = sphi 0, %s61
      %s76 = sphi 0, %s62
      %s80 = sphi 0, %s80
      %s82 = sphi 0, %s80
      %s83 = sphi 0, %s82
      %s97 = sphi 0, %s83
      %s101 = sphi 0, %s101
      %s103 = sphi 0, %s101
      %s104 = sphi 0, %s103
      %s118 = sphi 0, %s104
      %s126 = sphi 0, %s128
      %s129 = sphi 0, %s126
      %s130 = sphi 0, %s129
      %s146 = sphi 0, %s130
    $region4: #{tpu_custom_call.1} parent=1 // loop_header_branch
      %16 = sbr.rel (%p14) target = $region8
    $region5: #{tpu_custom_call.1} parent=1 // loop_body
      %s18 = ssub.s32 %s13, 1
      %s19 = ssub.s32 %s13, 2
      %s26 = sadd.s32 1, %s21
      %p27 = scmp.ge.s32.totalorder %s26, 4
      %s28 = scalar_select %p27, 0, %s26
      %s29 = sadd.s32 1, %s20
      %s30 = scalar_select %p27, %s29, %s20
      %p31 = scmp.ge.s32.totalorder %s30, 2
      %s32 = scalar_select %p31, 0, %s30
      %s33 = ssub.s32 %s20, %s32
      %p34 = scmp.eq.s32.totalorder %s33, 0
      %s36 = sadd.s32 %s35, 1
      %s37 = scalar_select %p34, %s35, %s36
      %p40 = pneg %p34
      %p41 = scmp.eq.s32.totalorder %s13, 7
      %p42 = por %p40, %p41
      %p43 = scmp.ne.s32.totalorder %s35, %s38
      %p44 = scmp.eq.s32.totalorder %s13, 0
      %p45 = por %p43, %p44
      %p46 = scmp.ne.s32.totalorder %s35, %s38
      %p47 = scmp.eq.s32.totalorder %s18, 7
      %p48 = por %p46, %p47
      %p49 = scmp.ne.s32.totalorder %s38, %s39
      %p50 = scmp.eq.s32.totalorder %s18, 0
      %p51 = por %p49, %p50
      %p52 = scmp.ne.s32.totalorder %s38, %s39
      %p53 = scmp.eq.s32.totalorder %s19, 7
      %p54 = por %p52, %p53
      %p56 = scmp.ne.s32.totalorder %s39, %s55
      %p57 = scmp.eq.s32.totalorder %s19, 0
      %p58 = por %p56, %p57
      %s60 = sadd.s32 %s59, 1
      %p63 = scmp.eq.s32.totalorder %s13, 7
      %p64 = scmp.ne.s32.totalorder %s59, %s61
      %p65 = scmp.eq.s32.totalorder %s13, 0
      %p66 = por %p64, %p65
      %p67 = scmp.ne.s32.totalorder %s59, %s61
      %p68 = scmp.eq.s32.totalorder %s18, 7
      %p69 = por %p67, %p68
      %p70 = scmp.ne.s32.totalorder %s61, %s62
      %p71 = scmp.eq.s32.totalorder %s18, 0
      %p72 = por %p70, %p71
      %p73 = scmp.ne.s32.totalorder %s61, %s62
      %p74 = scmp.eq.s32.totalorder %s19, 7
      %p75 = por %p73, %p74
      %p77 = scmp.ne.s32.totalorder %s62, %s76
      %p78 = scmp.eq.s32.totalorder %s19, 0
      %p79 = por %p77, %p78
      %s81 = sadd.s32 %s80, 1
      %p84 = scmp.eq.s32.totalorder %s13, 7
      %p85 = scmp.ne.s32.totalorder %s80, %s82
      %p86 = scmp.eq.s32.totalorder %s13, 0
      %p87 = por %p85, %p86
      %p88 = scmp.ne.s32.totalorder %s80, %s82
      %p89 = scmp.eq.s32.totalorder %s18, 7
      %p90 = por %p88, %p89
      %p91 = scmp.ne.s32.totalorder %s82, %s83
      %p92 = scmp.eq.s32.totalorder %s18, 0
      %p93 = por %p91, %p92
      %p94 = scmp.ne.s32.totalorder %s82, %s83
      %p95 = scmp.eq.s32.totalorder %s19, 7
      %p96 = por %p94, %p95
      %p98 = scmp.ne.s32.totalorder %s83, %s97
      %p99 = scmp.eq.s32.totalorder %s19, 0
      %p100 = por %p98, %p99
      %s102 = sadd.s32 %s101, 1
      %p105 = scmp.eq.s32.totalorder %s13, 7
      %p106 = scmp.ne.s32.totalorder %s101, %s103
      %p107 = scmp.eq.s32.totalorder %s13, 0
      %p108 = por %p106, %p107
      %p109 = scmp.ne.s32.totalorder %s101, %s103
      %p110 = scmp.eq.s32.totalorder %s18, 7
      %p111 = por %p109, %p110
      %p112 = scmp.ne.s32.totalorder %s103, %s104
      %p113 = scmp.eq.s32.totalorder %s18, 0
      %p114 = por %p112, %p113
      %p115 = scmp.ne.s32.totalorder %s103, %s104
      %p116 = scmp.eq.s32.totalorder %s19, 7
      %p117 = por %p115, %p116
      %p119 = scmp.ne.s32.totalorder %s104, %s118
      %p120 = scmp.eq.s32.totalorder %s19, 0
      %p121 = por %p119, %p120
      %s122 = ssub.s32 %s20, %s32
      %s123 = ssub.s32 %s21, %s28
      %s124 = sor.u32 %s122, %s123
      %p125 = scmp.eq.s32.totalorder %s124, 0
      %s127 = sadd.s32 %s126, 1
      %s128 = scalar_select %p125, %s126, %s127
      %p131 = pneg %p125
      %p132 = scmp.eq.s32.totalorder %s13, 7
      %p133 = por %p131, %p132
      %p134 = scmp.ne.s32.totalorder %s126, %s129
      %p135 = scmp.eq.s32.totalorder %s13, 0
      %p136 = por %p134, %p135
      %p137 = scmp.ne.s32.totalorder %s126, %s129
      %p138 = scmp.eq.s32.totalorder %s18, 7
      %p139 = por %p137, %p138
      %p140 = scmp.ne.s32.totalorder %s129, %s130
      %p141 = scmp.eq.s32.totalorder %s18, 0
      %p142 = por %p140, %p141
      %p143 = scmp.ne.s32.totalorder %s129, %s130
      %p144 = scmp.eq.s32.totalorder %s19, 7
      %p145 = por %p143, %p144
      %p147 = scmp.ne.s32.totalorder %s130, %s146
      %p148 = scmp.eq.s32.totalorder %s19, 0
      %p149 = por %p147, %p148
      %p150 = scmp.le.s32.totalorder 1, %s13
      %p151 = scmp.lt.s32.totalorder %s13, 9
      %p152 = pnand %p150, %p151
      %p153 = pneg %p152
      // Predicated region
      $region9: #{tpu_custom_call.1} parent=5 // pred_check
        _
      $region10: #{tpu_custom_call.1} parent=5 // pred_check_branch
        %155 = sbr.rel (%p152) target = $region12
      $region11: #{tpu_custom_call.1} parent=5 // pred_region
        %s156 = ssub.s32 %s13, 1
        // Predicated region
        $region13: #{tpu_custom_call.1} parent=11 // pred_check
          %p157 = pneg %p72
        $region14: #{tpu_custom_call.1} parent=11 // pred_check_branch
          %159 = sbr.rel (%p157) target = $region16
        $region15: #{tpu_custom_call.1} parent=11 // pred_region
          _
        $region16: #{tpu_custom_call.1} parent=11 // pred_fallthru
          _
        // Predicated region
        $region17: #{tpu_custom_call.1} parent=11 // pred_check
          %p160 = pneg %p93
        $region18: #{tpu_custom_call.1} parent=11 // pred_check_branch
          %162 = sbr.rel (%p160) target = $region20
        $region19: #{tpu_custom_call.1} parent=11 // pred_region
          _
        $region20: #{tpu_custom_call.1} parent=11 // pred_fallthru
          _
        // Predicated region
        $region21: #{tpu_custom_call.1} parent=11 // pred_check
          %p163 = pneg %p114
        $region22: #{tpu_custom_call.1} parent=11 // pred_check_branch
          %165 = sbr.rel (%p163) target = $region24
        $region23: #{tpu_custom_call.1} parent=11 // pred_region
          _
        $region24: #{tpu_custom_call.1} parent=11 // pred_fallthru
          _
      $region12: #{tpu_custom_call.1} parent=5 // pred_fallthru
        _
      %p166 = scmp.lt.s32.totalorder %s13, 8
      // Predicated region
      $region25: #{tpu_custom_call.1} parent=5 // pred_check
        %p167 = pneg %p166
      $region26: #{tpu_custom_call.1} parent=5 // pred_check_branch
        %169 = sbr.rel (%p167) target = $region28
      $region27: #{tpu_custom_call.1} parent=5 // pred_region
        // Predicated region
        $region29: #{tpu_custom_call.1} parent=27 // pred_check
          %p170 = pneg %p45
        $region30: #{tpu_custom_call.1} parent=27 // pred_check_branch
          %172 = sbr.rel (%p170) target = $region32
        $region31: #{tpu_custom_call.1} parent=27 // pred_region
          %p173 = scmp.lt.s32.totalorder %s20, 1
          %s174 = scalar_select %p173, %s20, 1
          %s175 = smul.addr %s174, 146
          %s176 = smul.addr %s175, 8
          %s177 = scalar_lea.vmem %s0, %s176
        $region32: #{tpu_custom_call.1} parent=27 // pred_fallthru
          _
      $region28: #{tpu_custom_call.1} parent=5 // pred_fallthru
        _
      %p178 = scmp.le.s32.totalorder 1, %s13
      %p179 = scmp.lt.s32.totalorder %s13, 9
      %p180 = pnand %p178, %p179
      %p181 = pneg %p180
      // Predicated region
      $region33: #{tpu_custom_call.1} parent=5 // pred_check
        _
      $region34: #{tpu_custom_call.1} parent=5 // pred_check_branch
        %183 = sbr.rel (%p180) target = $region36
      $region35: #{tpu_custom_call.1} parent=5 // pred_region
        %s184 = ssub.s32 %s13, 1
        %p185 = scmp.lt.s32.totalorder %s22, 1
        %s186 = scalar_select %p185, %s22, 1
        %s187 = smul.addr %s186, 146
        %s188 = smul.addr %s187, 8
        %s189 = scalar_lea.vmem %s0, %s188
        %p190 = pneg %p51
        %p191 = pneg %p48
        %p192 = pneg %p72
        %p193 = pneg %p69
        %p194 = pneg %p93
        %p195 = pneg %p90
        %p196 = pneg %p114
        %p197 = pneg %p111
        %p198 = pneg %p142
        %p199 = pneg %p139
        %s200 = sand.u32 %s129, 1
        %s201 = scalar_lea.sflag [#allocation4], %s200
        %s202 = sand.u32 %s129, 1
        %s203 = smul.addr %s202, 128
        %s204 = scalar_lea.vmem [#allocation3], %s203
        %p205 = scmp.lt.s32.totalorder %s22, 1
        %s206 = scalar_select %p205, %s22, 1
        %s207 = smul.addr %s206, 146
        %s208 = smul.addr %s207, 8
        %s209 = scalar_lea.vmem %s0, %s208
        %s210 = smul.u32 8, %s23
        %s211 = smul.u32 %s23, 272
        %s212 = scalar_lea.vmem %s209, %s211
        %v213 = vld [vmem:[%s212] sm:$0xff]
        %v214 = vld [vmem:[%s212 + $0x8] sm:$0xff]
        %v215 = vld [vmem:[%s212 + $0x10] sm:$0xff]
        %v216 = vld [vmem:[%s212 + $0x18] sm:$0xff]
        %v217 = vld [vmem:[%s212 + $0x20] sm:$0xff]
        %v218 = vld [vmem:[%s212 + $0x28] sm:$0xff]
        %v219 = vld [vmem:[%s212 + $0x30] sm:$0xff]
        %v220 = vld [vmem:[%s212 + $0x38] sm:$0xff]
        %v221 = vld [vmem:[%s212 + $0x40] sm:$0xff]
        %v222 = vld [vmem:[%s212 + $0x48] sm:$0xff]
        %v223 = vld [vmem:[%s212 + $0x50] sm:$0xff]
        %v224 = vld [vmem:[%s212 + $0x58] sm:$0xff]
        %v225 = vld [vmem:[%s212 + $0x60] sm:$0xff]
        %v226 = vld [vmem:[%s212 + $0x68] sm:$0xff]
        %v227 = vld [vmem:[%s212 + $0x70] sm:$0xff]
        %v228 = vld [vmem:[%s212 + $0x78] sm:$0xff]
        %v229 = vld [vmem:[%s212 + $0x80] sm:$0xff]
        %v230 = vld [vmem:[%s212 + $0x88] sm:$0xff]
        %v231 = vld [vmem:[%s212 + $0x90] sm:$0xff]
        %v232 = vld [vmem:[%s212 + $0x98] sm:$0xff]
        %v233 = vld [vmem:[%s212 + $0xa0] sm:$0xff]
        %v234 = vld [vmem:[%s212 + $0xa8] sm:$0xff]
        %v235 = vld [vmem:[%s212 + $0xb0] sm:$0xff]
        %v236 = vld [vmem:[%s212 + $0xb8] sm:$0xff]
        %v237 = vld [vmem:[%s212 + $0xc0] sm:$0xff]
        %v238 = vld [vmem:[%s212 + $0xc8] sm:$0xff]
        %v239 = vld [vmem:[%s212 + $0xd0] sm:$0xff]
        %v240 = vld [vmem:[%s212 + $0xd8] sm:$0xff]
        %v241 = vld [vmem:[%s212 + $0xe0] sm:$0xff]
        %v242 = vld [vmem:[%s212 + $0xe8] sm:$0xff]
        %v243 = vld [vmem:[%s212 + $0xf0] sm:$0xff]
        %v244 = vld [vmem:[%s212 + $0xf8] sm:$0xff]
        %v245 = vld [vmem:[%s212 + $0x100] sm:$0xff]
        %v246 = vld [vmem:[%s212 + $0x108] sm:$0xff]
        %v247 = vld [vmem:[%s1] sm:$0x1]
        %249 = vset.pattern.permute.xlu0 0
        %250 = vperm.xlu0 %249, %v213
        %v251 = vpop.permute.xlu0 %250
        %254 = vset.pattern.permute.xlu0 0
        %255 = vperm.xlu0 %254, %v214
        %v256 = vpop.permute.xlu0 %255
        %259 = vset.pattern.permute.xlu0 0
        %260 = vperm.xlu0 %259, %v215
        %v261 = vpop.permute.xlu0 %260
        %264 = vset.pattern.permute.xlu0 0
        %265 = vperm.xlu0 %264, %v216
        %v266 = vpop.permute.xlu0 %265
        %269 = vset.pattern.permute.xlu0 0
        %270 = vperm.xlu0 %269, %v217
        %v271 = vpop.permute.xlu0 %270
        %274 = vset.pattern.permute.xlu0 0
        %275 = vperm.xlu0 %274, %v218
        %v276 = vpop.permute.xlu0 %275
        %279 = vset.pattern.permute.xlu0 0
        %280 = vperm.xlu0 %279, %v219
        %v281 = vpop.permute.xlu0 %280
        %284 = vset.pattern.permute.xlu0 0
        %285 = vperm.xlu0 %284, %v220
        %v286 = vpop.permute.xlu0 %285
        %289 = vset.pattern.permute.xlu0 0
        %290 = vperm.xlu0 %289, %v221
        %v291 = vpop.permute.xlu0 %290
        %294 = vset.pattern.permute.xlu0 0
        %295 = vperm.xlu0 %294, %v222
        %v296 = vpop.permute.xlu0 %295
        %299 = vset.pattern.permute.xlu0 0
        %300 = vperm.xlu0 %299, %v223
        %v301 = vpop.permute.xlu0 %300
        %304 = vset.pattern.permute.xlu0 0
        %305 = vperm.xlu0 %304, %v224
        %v306 = vpop.permute.xlu0 %305
        %309 = vset.pattern.permute.xlu0 0
        %310 = vperm.xlu0 %309, %v225
        %v311 = vpop.permute.xlu0 %310
        %314 = vset.pattern.permute.xlu0 0
        %315 = vperm.xlu0 %314, %v226
        %v316 = vpop.permute.xlu0 %315
        %319 = vset.pattern.permute.xlu0 0
        %320 = vperm.xlu0 %319, %v227
        %v321 = vpop.permute.xlu0 %320
        %324 = vset.pattern.permute.xlu0 0
        %325 = vperm.xlu0 %324, %v228
        %v326 = vpop.permute.xlu0 %325
        %329 = vset.pattern.permute.xlu0 0
        %330 = vperm.xlu0 %329, %v229
        %v331 = vpop.permute.xlu0 %330
        %334 = vset.pattern.permute.xlu0 0
        %335 = vperm.xlu0 %334, %v230
        %v336 = vpop.permute.xlu0 %335
        %339 = vset.pattern.permute.xlu0 0
        %340 = vperm.xlu0 %339, %v231
        %v341 = vpop.permute.xlu0 %340
        %344 = vset.pattern.permute.xlu0 0
        %345 = vperm.xlu0 %344, %v232
        %v346 = vpop.permute.xlu0 %345
        %349 = vset.pattern.permute.xlu0 0
        %350 = vperm.xlu0 %349, %v233
        %v351 = vpop.permute.xlu0 %350
        %354 = vset.pattern.permute.xlu0 0
        %355 = vperm.xlu0 %354, %v234
        %v356 = vpop.permute.xlu0 %355
        %359 = vset.pattern.permute.xlu0 0
        %360 = vperm.xlu0 %359, %v235
        %v361 = vpop.permute.xlu0 %360
        %364 = vset.pattern.permute.xlu0 0
        %365 = vperm.xlu0 %364, %v236
        %v366 = vpop.permute.xlu0 %365
        %369 = vset.pattern.permute.xlu0 0
        %370 = vperm.xlu0 %369, %v237
        %v371 = vpop.permute.xlu0 %370
        %374 = vset.pattern.permute.xlu0 0
        %375 = vperm.xlu0 %374, %v238
        %v376 = vpop.permute.xlu0 %375
        %379 = vset.pattern.permute.xlu0 0
        %380 = vperm.xlu0 %379, %v239
        %v381 = vpop.permute.xlu0 %380
        %384 = vset.pattern.permute.xlu0 0
        %385 = vperm.xlu0 %384, %v240
        %v386 = vpop.permute.xlu0 %385
        %389 = vset.pattern.permute.xlu0 0
        %390 = vperm.xlu0 %389, %v241
        %v391 = vpop.permute.xlu0 %390
        %394 = vset.pattern.permute.xlu0 0
        %395 = vperm.xlu0 %394, %v242
        %v396 = vpop.permute.xlu0 %395
        %399 = vset.pattern.permute.xlu0 0
        %400 = vperm.xlu0 %399, %v243
        %v401 = vpop.permute.xlu0 %400
        %404 = vset.pattern.permute.xlu0 0
        %405 = vperm.xlu0 %404, %v244
        %v406 = vpop.permute.xlu0 %405
        %409 = vset.pattern.permute.xlu0 0
        %410 = vperm.xlu0 %409, %v245
        %v411 = vpop.permute.xlu0 %410
        %414 = vset.pattern.permute.xlu0 0
        %415 = vperm.xlu0 %414, %v246
        %v416 = vpop.permute.xlu0 %415
        %v419 = vlaneseq
        %v420 = vshrl.u32 %v419, 7
        %v421 = vsub.s32 0, %v420
        %v422 = vrot.slane %v247, %v421
        %v424 = vmul.f32 %v251, %v422
        %v425 = vmul.f32 %v256, %v422
        %v426 = vmul.f32 %v261, %v422
        %v427 = vmul.f32 %v266, %v422
        %v428 = vmul.f32 %v271, %v422
        %v429 = vmul.f32 %v276, %v422
        %v430 = vmul.f32 %v281, %v422
        %v431 = vmul.f32 %v286, %v422
        %v432 = vmul.f32 %v291, %v422
        %v433 = vmul.f32 %v296, %v422
        %v434 = vmul.f32 %v301, %v422
        %v435 = vmul.f32 %v306, %v422
        %v436 = vmul.f32 %v311, %v422
        %v437 = vmul.f32 %v316, %v422
        %v438 = vmul.f32 %v321, %v422
        %v439 = vmul.f32 %v326, %v422
        %v440 = vmul.f32 %v331, %v422
        %v441 = vmul.f32 %v336, %v422
        %v442 = vmul.f32 %v341, %v422
        %v443 = vmul.f32 %v346, %v422
        %v444 = vmul.f32 %v351, %v422
        %v445 = vmul.f32 %v356, %v422
        %v446 = vmul.f32 %v361, %v422
        %v447 = vmul.f32 %v366, %v422
        %v448 = vmul.f32 %v371, %v422
        %v449 = vmul.f32 %v376, %v422
        %v450 = vmul.f32 %v381, %v422
        %v451 = vmul.f32 %v386, %v422
        %v452 = vmul.f32 %v391, %v422
        %v453 = vmul.f32 %v396, %v422
        %v454 = vmul.f32 %v401, %v422
        %v455 = vmul.f32 %v406, %v422
        %v456 = vmul.f32 %v411, %v422
        %v457 = vmul.f32 %v416, %v422
        %v458 = vadd.f32 %v424, 0.0
        %v459 = vadd.f32 %v425, 0.0
        %v460 = vadd.f32 %v426, 0.0
        %v461 = vadd.f32 %v427, 0.0
        %v462 = vadd.f32 %v428, 0.0
        %v463 = vadd.f32 %v429, 0.0
        %v464 = vadd.f32 %v430, 0.0
        %v465 = vadd.f32 %v431, 0.0
        %v466 = vadd.f32 %v432, 0.0
        %v467 = vadd.f32 %v433, 0.0
        %v468 = vadd.f32 %v434, 0.0
        %v469 = vadd.f32 %v435, 0.0
        %v470 = vadd.f32 %v436, 0.0
        %v471 = vadd.f32 %v437, 0.0
        %v472 = vadd.f32 %v438, 0.0
        %v473 = vadd.f32 %v439, 0.0
        %v474 = vadd.f32 %v440, 0.0
        %v475 = vadd.f32 %v441, 0.0
        %v476 = vadd.f32 %v442, 0.0
        %v477 = vadd.f32 %v443, 0.0
        %v478 = vadd.f32 %v444, 0.0
        %v479 = vadd.f32 %v445, 0.0
        %v480 = vadd.f32 %v446, 0.0
        %v481 = vadd.f32 %v447, 0.0
        %v482 = vadd.f32 %v448, 0.0
        %v483 = vadd.f32 %v449, 0.0
        %v484 = vadd.f32 %v450, 0.0
        %v485 = vadd.f32 %v451, 0.0
        %v486 = vadd.f32 %v452, 0.0
        %v487 = vadd.f32 %v453, 0.0
        %v488 = vadd.f32 %v454, 0.0
        %v489 = vadd.f32 %v455, 0.0
        %v490 = vadd.f32 %v456, 0.0
        %v491 = vadd.f32 %v457, 0.0
        %s492 = sadd.s32 %s211, 1
        %s493 = scalar_lea.vmem %s209, %s492
        %v494 = vld [vmem:[%s493] sm:$0xff]
        %v495 = vld [vmem:[%s493 + $0x8] sm:$0xff]
        %v496 = vld [vmem:[%s493 + $0x10] sm:$0xff]
        %v497 = vld [vmem:[%s493 + $0x18] sm:$0xff]
        %v498 = vld [vmem:[%s493 + $0x20] sm:$0xff]
        %v499 = vld [vmem:[%s493 + $0x28] sm:$0xff]
        %v500 = vld [vmem:[%s493 + $0x30] sm:$0xff]
        %v501 = vld [vmem:[%s493 + $0x38] sm:$0xff]
        %v502 = vld [vmem:[%s493 + $0x40] sm:$0xff]
        %v503 = vld [vmem:[%s493 + $0x48] sm:$0xff]
        %v504 = vld [vmem:[%s493 + $0x50] sm:$0xff]
        %v505 = vld [vmem:[%s493 + $0x58] sm:$0xff]
        %v506 = vld [vmem:[%s493 + $0x60] sm:$0xff]
        %v507 = vld [vmem:[%s493 + $0x68] sm:$0xff]
        %v508 = vld [vmem:[%s493 + $0x70] sm:$0xff]
        %v509 = vld [vmem:[%s493 + $0x78] sm:$0xff]
        %v510 = vld [vmem:[%s493 + $0x80] sm:$0xff]
        %v511 = vld [vmem:[%s493 + $0x88] sm:$0xff]
        %v512 = vld [vmem:[%s493 + $0x90] sm:$0xff]
        %v513 = vld [vmem:[%s493 + $0x98] sm:$0xff]
        %v514 = vld [vmem:[%s493 + $0xa0] sm:$0xff]
        %v515 = vld [vmem:[%s493 + $0xa8] sm:$0xff]
        %v516 = vld [vmem:[%s493 + $0xb0] sm:$0xff]
        %v517 = vld [vmem:[%s493 + $0xb8] sm:$0xff]
        %v518 = vld [vmem:[%s493 + $0xc0] sm:$0xff]
        %v519 = vld [vmem:[%s493 + $0xc8] sm:$0xff]
        %v520 = vld [vmem:[%s493 + $0xd0] sm:$0xff]
        %v521 = vld [vmem:[%s493 + $0xd8] sm:$0xff]
        %v522 = vld [vmem:[%s493 + $0xe0] sm:$0xff]
        %v523 = vld [vmem:[%s493 + $0xe8] sm:$0xff]
        %v524 = vld [vmem:[%s493 + $0xf0] sm:$0xff]
        %v525 = vld [vmem:[%s493 + $0xf8] sm:$0xff]
        %v526 = vld [vmem:[%s493 + $0x100] sm:$0xff]
        %v527 = vld [vmem:[%s493 + $0x108] sm:$0xff]
        %s528 = scalar_lea.vmem %s1, 1
        %v529 = vld [vmem:[%s528] sm:$0x1]
        %531 = vset.pattern.permute.xlu0 0
        %532 = vperm.xlu0 %531, %v494
        %v533 = vpop.permute.xlu0 %532
        %536 = vset.pattern.permute.xlu0 0
        %537 = vperm.xlu0 %536, %v495
        %v538 = vpop.permute.xlu0 %537
        %541 = vset.pattern.permute.xlu0 0
        %542 = vperm.xlu0 %541, %v496
        %v543 = vpop.permute.xlu0 %542
        %546 = vset.pattern.permute.xlu0 0
        %547 = vperm.xlu0 %546, %v497
        %v548 = vpop.permute.xlu0 %547
        %551 = vset.pattern.permute.xlu0 0
        %552 = vperm.xlu0 %551, %v498
        %v553 = vpop.permute.xlu0 %552
        %556 = vset.pattern.permute.xlu0 0
        %557 = vperm.xlu0 %556, %v499
        %v558 = vpop.permute.xlu0 %557
        %561 = vset.pattern.permute.xlu0 0
        %562 = vperm.xlu0 %561, %v500
        %v563 = vpop.permute.xlu0 %562
        %566 = vset.pattern.permute.xlu0 0
        %567 = vperm.xlu0 %566, %v501
        %v568 = vpop.permute.xlu0 %567
        %571 = vset.pattern.permute.xlu0 0
        %572 = vperm.xlu0 %571, %v502
        %v573 = vpop.permute.xlu0 %572
        %576 = vset.pattern.permute.xlu0 0
        %577 = vperm.xlu0 %576, %v503
        %v578 = vpop.permute.xlu0 %577
        %581 = vset.pattern.permute.xlu0 0
        %582 = vperm.xlu0 %581, %v504
        %v583 = vpop.permute.xlu0 %582
        %586 = vset.pattern.permute.xlu0 0
        %587 = vperm.xlu0 %586, %v505
        %v588 = vpop.permute.xlu0 %587
        %591 = vset.pattern.permute.xlu0 0
        %592 = vperm.xlu0 %591, %v506
        %v593 = vpop.permute.xlu0 %592
        %596 = vset.pattern.permute.xlu0 0
        %597 = vperm.xlu0 %596, %v507
        %v598 = vpop.permute.xlu0 %597
        %601 = vset.pattern.permute.xlu0 0
        %602 = vperm.xlu0 %601, %v508
        %v603 = vpop.permute.xlu0 %602
        %606 = vset.pattern.permute.xlu0 0
        %607 = vperm.xlu0 %606, %v509
        %v608 = vpop.permute.xlu0 %607
        %611 = vset.pattern.permute.xlu0 0
        %612 = vperm.xlu0 %611, %v510
        %v613 = vpop.permute.xlu0 %612
        %616 = vset.pattern.permute.xlu0 0
        %617 = vperm.xlu0 %616, %v511
        %v618 = vpop.permute.xlu0 %617
        %621 = vset.pattern.permute.xlu0 0
        %622 = vperm.xlu0 %621, %v512
        %v623 = vpop.permute.xlu0 %622
        %626 = vset.pattern.permute.xlu0 0
        %627 = vperm.xlu0 %626, %v513
        %v628 = vpop.permute.xlu0 %627
        %631 = vset.pattern.permute.xlu0 0
        %632 = vperm.xlu0 %631, %v514
        %v633 = vpop.permute.xlu0 %632
        %636 = vset.pattern.permute.xlu0 0
        %637 = vperm.xlu0 %636, %v515
        %v638 = vpop.permute.xlu0 %637
        %641 = vset.pattern.permute.xlu0 0
        %642 = vperm.xlu0 %641, %v516
        %v643 = vpop.permute.xlu0 %642
        %646 = vset.pattern.permute.xlu0 0
        %647 = vperm.xlu0 %646, %v517
        %v648 = vpop.permute.xlu0 %647
        %651 = vset.pattern.permute.xlu0 0
        %652 = vperm.xlu0 %651, %v518
        %v653 = vpop.permute.xlu0 %652
        %656 = vset.pattern.permute.xlu0 0
        %657 = vperm.xlu0 %656, %v519
        %v658 = vpop.permute.xlu0 %657
        %661 = vset.pattern.permute.xlu0 0
        %662 = vperm.xlu0 %661, %v520
        %v663 = vpop.permute.xlu0 %662
        %666 = vset.pattern.permute.xlu0 0
        %667 = vperm.xlu0 %666, %v521
        %v668 = vpop.permute.xlu0 %667
        %671 = vset.pattern.permute.xlu0 0
        %672 = vperm.xlu0 %671, %v522
        %v673 = vpop.permute.xlu0 %672
        %676 = vset.pattern.permute.xlu0 0
        %677 = vperm.xlu0 %676, %v523
        %v678 = vpop.permute.xlu0 %677
        %681 = vset.pattern.permute.xlu0 0
        %682 = vperm.xlu0 %681, %v524
        %v683 = vpop.permute.xlu0 %682
        %686 = vset.pattern.permute.xlu0 0
        %687 = vperm.xlu0 %686, %v525
        %v688 = vpop.permute.xlu0 %687
        %691 = vset.pattern.permute.xlu0 0
        %692 = vperm.xlu0 %691, %v526
        %v693 = vpop.permute.xlu0 %692
        %696 = vset.pattern.permute.xlu0 0
        %697 = vperm.xlu0 %696, %v527
        %v698 = vpop.permute.xlu0 %697
        %v701 = vlaneseq
        %v702 = vshrl.u32 %v701, 7
        %v703 = vsub.s32 0, %v702
        %v704 = vrot.slane %v529, %v703
        %v706 = vmul.f32 %v533, %v704
        %v707 = vmul.f32 %v538, %v704
        %v708 = vmul.f32 %v543, %v704
        %v709 = vmul.f32 %v548, %v704
        %v710 = vmul.f32 %v553, %v704
        %v711 = vmul.f32 %v558, %v704
        %v712 = vmul.f32 %v563, %v704
        %v713 = vmul.f32 %v568, %v704
        %v714 = vmul.f32 %v573, %v704
        %v715 = vmul.f32 %v578, %v704
        %v716 = vmul.f32 %v583, %v704
        %v717 = vmul.f32 %v588, %v704
        %v718 = vmul.f32 %v593, %v704
        %v719 = vmul.f32 %v598, %v704
        %v720 = vmul.f32 %v603, %v704
        %v721 = vmul.f32 %v608, %v704
        %v722 = vmul.f32 %v613, %v704
        %v723 = vmul.f32 %v618, %v704
        %v724 = vmul.f32 %v623, %v704
        %v725 = vmul.f32 %v628, %v704
        %v726 = vmul.f32 %v633, %v704
        %v727 = vmul.f32 %v638, %v704
        %v728 = vmul.f32 %v643, %v704
        %v729 = vmul.f32 %v648, %v704
        %v730 = vmul.f32 %v653, %v704
        %v731 = vmul.f32 %v658, %v704
        %v732 = vmul.f32 %v663, %v704
        %v733 = vmul.f32 %v668, %v704
        %v734 = vmul.f32 %v673, %v704
        %v735 = vmul.f32 %v678, %v704
        %v736 = vmul.f32 %v683, %v704
        %v737 = vmul.f32 %v688, %v704
        %v738 = vmul.f32 %v693, %v704
        %v739 = vmul.f32 %v698, %v704
        %v740 = vadd.f32 %v458, %v706
        %v741 = vadd.f32 %v459, %v707
        %v742 = vadd.f32 %v460, %v708
        %v743 = vadd.f32 %v461, %v709
        %v744 = vadd.f32 %v462, %v710
        %v745 = vadd.f32 %v463, %v711
        %v746 = vadd.f32 %v464, %v712
        %v747 = vadd.f32 %v465, %v713
        %v748 = vadd.f32 %v466, %v714
        %v749 = vadd.f32 %v467, %v715
        %v750 = vadd.f32 %v468, %v716
        %v751 = vadd.f32 %v469, %v717
        %v752 = vadd.f32 %v470, %v718
        %v753 = vadd.f32 %v471, %v719
        %v754 = vadd.f32 %v472, %v720
        %v755 = vadd.f32 %v473, %v721
        %v756 = vadd.f32 %v474, %v722
        %v757 = vadd.f32 %v475, %v723
        %v758 = vadd.f32 %v476, %v724
        %v759 = vadd.f32 %v477, %v725
        %v760 = vadd.f32 %v478, %v726
        %v761 = vadd.f32 %v479, %v727
        %v762 = vadd.f32 %v480, %v728
        %v763 = vadd.f32 %v481, %v729
        %v764 = vadd.f32 %v482, %v730
        %v765 = vadd.f32 %v483, %v731
        %v766 = vadd.f32 %v484, %v732
        %v767 = vadd.f32 %v485, %v733
        %v768 = vadd.f32 %v486, %v734
        %v769 = vadd.f32 %v487, %v735
        %v770 = vadd.f32 %v488, %v736
        %v771 = vadd.f32 %v489, %v737
        %v772 = vadd.f32 %v490, %v738
        %v773 = vadd.f32 %v491, %v739
        %s774 = sadd.s32 %s211, 2
        %s775 = scalar_lea.vmem %s209, %s774
        %v776 = vld [vmem:[%s775] sm:$0xff]
        %v777 = vld [vmem:[%s775 + $0x8] sm:$0xff]
        %v778 = vld [vmem:[%s775 + $0x10] sm:$0xff]
        %v779 = vld [vmem:[%s775 + $0x18] sm:$0xff]
        %v780 = vld [vmem:[%s775 + $0x20] sm:$0xff]
        %v781 = vld [vmem:[%s775 + $0x28] sm:$0xff]
        %v782 = vld [vmem:[%s775 + $0x30] sm:$0xff]
        %v783 = vld [vmem:[%s775 + $0x38] sm:$0xff]
        %v784 = vld [vmem:[%s775 + $0x40] sm:$0xff]
        %v785 = vld [vmem:[%s775 + $0x48] sm:$0xff]
        %v786 = vld [vmem:[%s775 + $0x50] sm:$0xff]
        %v787 = vld [vmem:[%s775 + $0x58] sm:$0xff]
        %v788 = vld [vmem:[%s775 + $0x60] sm:$0xff]
        %v789 = vld [vmem:[%s775 + $0x68] sm:$0xff]
        %v790 = vld [vmem:[%s775 + $0x70] sm:$0xff]
        %v791 = vld [vmem:[%s775 + $0x78] sm:$0xff]
        %v792 = vld [vmem:[%s775 + $0x80] sm:$0xff]
        %v793 = vld [vmem:[%s775 + $0x88] sm:$0xff]
        %v794 = vld [vmem:[%s775 + $0x90] sm:$0xff]
        %v795 = vld [vmem:[%s775 + $0x98] sm:$0xff]
        %v796 = vld [vmem:[%s775 + $0xa0] sm:$0xff]
        %v797 = vld [vmem:[%s775 + $0xa8] sm:$0xff]
        %v798 = vld [vmem:[%s775 + $0xb0] sm:$0xff]
        %v799 = vld [vmem:[%s775 + $0xb8] sm:$0xff]
        %v800 = vld [vmem:[%s775 + $0xc0] sm:$0xff]
        %v801 = vld [vmem:[%s775 + $0xc8] sm:$0xff]
        %v802 = vld [vmem:[%s775 + $0xd0] sm:$0xff]
        %v803 = vld [vmem:[%s775 + $0xd8] sm:$0xff]
        %v804 = vld [vmem:[%s775 + $0xe0] sm:$0xff]
        %v805 = vld [vmem:[%s775 + $0xe8] sm:$0xff]
        %v806 = vld [vmem:[%s775 + $0xf0] sm:$0xff]
        %v807 = vld [vmem:[%s775 + $0xf8] sm:$0xff]
        %v808 = vld [vmem:[%s775 + $0x100] sm:$0xff]
        %v809 = vld [vmem:[%s775 + $0x108] sm:$0xff]
        %s810 = scalar_lea.vmem %s1, 2
        %v811 = vld [vmem:[%s810] sm:$0x1]
        %813 = vset.pattern.permute.xlu0 0
        %814 = vperm.xlu0 %813, %v776
        %v815 = vpop.permute.xlu0 %814
        %818 = vset.pattern.permute.xlu0 0
        %819 = vperm.xlu0 %818, %v777
        %v820 = vpop.permute.xlu0 %819
        %823 = vset.pattern.permute.xlu0 0
        %824 = vperm.xlu0 %823, %v778
        %v825 = vpop.permute.xlu0 %824
        %828 = vset.pattern.permute.xlu0 0
        %829 = vperm.xlu0 %828, %v779
        %v830 = vpop.permute.xlu0 %829
        %833 = vset.pattern.permute.xlu0 0
        %834 = vperm.xlu0 %833, %v780
        %v835 = vpop.permute.xlu0 %834
        %838 = vset.pattern.permute.xlu0 0
        %839 = vperm.xlu0 %838, %v781
        %v840 = vpop.permute.xlu0 %839
        %843 = vset.pattern.permute.xlu0 0
        %844 = vperm.xlu0 %843, %v782
        %v845 = vpop.permute.xlu0 %844
        %848 = vset.pattern.permute.xlu0 0
        %849 = vperm.xlu0 %848, %v783
        %v850 = vpop.permute.xlu0 %849
        %853 = vset.pattern.permute.xlu0 0
        %854 = vperm.xlu0 %853, %v784
        %v855 = vpop.permute.xlu0 %854
        %858 = vset.pattern.permute.xlu0 0
        %859 = vperm.xlu0 %858, %v785
        %v860 = vpop.permute.xlu0 %859
        %863 = vset.pattern.permute.xlu0 0
        %864 = vperm.xlu0 %863, %v786
        %v865 = vpop.permute.xlu0 %864
        %868 = vset.pattern.permute.xlu0 0
        %869 = vperm.xlu0 %868, %v787
        %v870 = vpop.permute.xlu0 %869
        %873 = vset.pattern.permute.xlu0 0
        %874 = vperm.xlu0 %873, %v788
        %v875 = vpop.permute.xlu0 %874
        %878 = vset.pattern.permute.xlu0 0
        %879 = vperm.xlu0 %878, %v789
        %v880 = vpop.permute.xlu0 %879
        %883 = vset.pattern.permute.xlu0 0
        %884 = vperm.xlu0 %883, %v790
        %v885 = vpop.permute.xlu0 %884
        %888 = vset.pattern.permute.xlu0 0
        %889 = vperm.xlu0 %888, %v791
        %v890 = vpop.permute.xlu0 %889
        %893 = vset.pattern.permute.xlu0 0
        %894 = vperm.xlu0 %893, %v792
        %v895 = vpop.permute.xlu0 %894
        %898 = vset.pattern.permute.xlu0 0
        %899 = vperm.xlu0 %898, %v793
        %v900 = vpop.permute.xlu0 %899
        %903 = vset.pattern.permute.xlu0 0
        %904 = vperm.xlu0 %903, %v794
        %v905 = vpop.permute.xlu0 %904
        %908 = vset.pattern.permute.xlu0 0
        %909 = vperm.xlu0 %908, %v795
        %v910 = vpop.permute.xlu0 %909
        %913 = vset.pattern.permute.xlu0 0
        %914 = vperm.xlu0 %913, %v796
        %v915 = vpop.permute.xlu0 %914
        %918 = vset.pattern.permute.xlu0 0
        %919 = vperm.xlu0 %918, %v797
        %v920 = vpop.permute.xlu0 %919
        %923 = vset.pattern.permute.xlu0 0
        %924 = vperm.xlu0 %923, %v798
        %v925 = vpop.permute.xlu0 %924
        %928 = vset.pattern.permute.xlu0 0
        %929 = vperm.xlu0 %928, %v799
        %v930 = vpop.permute.xlu0 %929
        %933 = vset.pattern.permute.xlu0 0
        %934 = vperm.xlu0 %933, %v800
        %v935 = vpop.permute.xlu0 %934
        %938 = vset.pattern.permute.xlu0 0
        %939 = vperm.xlu0 %938, %v801
        %v940 = vpop.permute.xlu0 %939
        %943 = vset.pattern.permute.xlu0 0
        %944 = vperm.xlu0 %943, %v802
        %v945 = vpop.permute.xlu0 %944
        %948 = vset.pattern.permute.xlu0 0
        %949 = vperm.xlu0 %948, %v803
        %v950 = vpop.permute.xlu0 %949
        %953 = vset.pattern.permute.xlu0 0
        %954 = vperm.xlu0 %953, %v804
        %v955 = vpop.permute.xlu0 %954
        %958 = vset.pattern.permute.xlu0 0
        %959 = vperm.xlu0 %958, %v805
        %v960 = vpop.permute.xlu0 %959
        %963 = vset.pattern.permute.xlu0 0
        %964 = vperm.xlu0 %963, %v806
        %v965 = vpop.permute.xlu0 %964
        %968 = vset.pattern.permute.xlu0 0
        %969 = vperm.xlu0 %968, %v807
        %v970 = vpop.permute.xlu0 %969
        %973 = vset.pattern.permute.xlu0 0
        %974 = vperm.xlu0 %973, %v808
        %v975 = vpop.permute.xlu0 %974
        %978 = vset.pattern.permute.xlu0 0
        %979 = vperm.xlu0 %978, %v809
        %v980 = vpop.permute.xlu0 %979
        %v983 = vlaneseq
        %v984 = vshrl.u32 %v983, 7
        %v985 = vsub.s32 0, %v984
        %v986 = vrot.slane %v811, %v985
        %v988 = vmul.f32 %v815, %v986
        %v989 = vmul.f32 %v820, %v986
        %v990 = vmul.f32 %v825, %v986
        %v991 = vmul.f32 %v830, %v986
        %v992 = vmul.f32 %v835, %v986
        %v993 = vmul.f32 %v840, %v986
        %v994 = vmul.f32 %v845, %v986
        %v995 = vmul.f32 %v850, %v986
        %v996 = vmul.f32 %v855, %v986
        %v997 = vmul.f32 %v860, %v986
        %v998 = vmul.f32 %v865, %v986
        %v999 = vmul.f32 %v870, %v986
        %v1000 = vmul.f32 %v875, %v986
        %v1001 = vmul.f32 %v880, %v986
        %v1002 = vmul.f32 %v885, %v986
        %v1003 = vmul.f32 %v890, %v986
        %v1004 = vmul.f32 %v895, %v986
        %v1005 = vmul.f32 %v900, %v986
        %v1006 = vmul.f32 %v905, %v986
        %v1007 = vmul.f32 %v910, %v986
        %v1008 = vmul.f32 %v915, %v986
        %v1009 = vmul.f32 %v920, %v986
        %v1010 = vmul.f32 %v925, %v986
        %v1011 = vmul.f32 %v930, %v986
        %v1012 = vmul.f32 %v935, %v986
        %v1013 = vmul.f32 %v940, %v986
        %v1014 = vmul.f32 %v945, %v986
        %v1015 = vmul.f32 %v950, %v986
        %v1016 = vmul.f32 %v955, %v986
        %v1017 = vmul.f32 %v960, %v986
        %v1018 = vmul.f32 %v965, %v986
        %v1019 = vmul.f32 %v970, %v986
        %v1020 = vmul.f32 %v975, %v986
        %v1021 = vmul.f32 %v980, %v986
        %v1022 = vadd.f32 %v740, %v988
        %v1023 = vadd.f32 %v741, %v989
        %v1024 = vadd.f32 %v742, %v990
        %v1025 = vadd.f32 %v743, %v991
        %v1026 = vadd.f32 %v744, %v992
        %v1027 = vadd.f32 %v745, %v993
        %v1028 = vadd.f32 %v746, %v994
        %v1029 = vadd.f32 %v747, %v995
        %v1030 = vadd.f32 %v748, %v996
        %v1031 = vadd.f32 %v749, %v997
        %v1032 = vadd.f32 %v750, %v998
        %v1033 = vadd.f32 %v751, %v999
        %v1034 = vadd.f32 %v752, %v1000
        %v1035 = vadd.f32 %v753, %v1001
        %v1036 = vadd.f32 %v754, %v1002
        %v1037 = vadd.f32 %v755, %v1003
        %v1038 = vadd.f32 %v756, %v1004
        %v1039 = vadd.f32 %v757, %v1005
        %v1040 = vadd.f32 %v758, %v1006
        %v1041 = vadd.f32 %v759, %v1007
        %v1042 = vadd.f32 %v760, %v1008
        %v1043 = vadd.f32 %v761, %v1009
        %v1044 = vadd.f32 %v762, %v1010
        %v1045 = vadd.f32 %v763, %v1011
        %v1046 = vadd.f32 %v764, %v1012
        %v1047 = vadd.f32 %v765, %v1013
        %v1048 = vadd.f32 %v766, %v1014
        %v1049 = vadd.f32 %v767, %v1015
        %v1050 = vadd.f32 %v768, %v1016
        %v1051 = vadd.f32 %v769, %v1017
        %v1052 = vadd.f32 %v770, %v1018
        %v1053 = vadd.f32 %v771, %v1019
        %v1054 = vadd.f32 %v772, %v1020
        %v1055 = vadd.f32 %v773, %v1021
        %s1056 = sadd.s32 %s211, 34
        %s1057 = scalar_lea.vmem %s209, %s1056
        %v1058 = vld [vmem:[%s1057] sm:$0xff]
        %v1059 = vld [vmem:[%s1057 + $0x8] sm:$0xff]
        %v1060 = vld [vmem:[%s1057 + $0x10] sm:$0xff]
        %v1061 = vld [vmem:[%s1057 + $0x18] sm:$0xff]
        %v1062 = vld [vmem:[%s1057 + $0x20] sm:$0xff]
        %v1063 = vld [vmem:[%s1057 + $0x28] sm:$0xff]
        %v1064 = vld [vmem:[%s1057 + $0x30] sm:$0xff]
        %v1065 = vld [vmem:[%s1057 + $0x38] sm:$0xff]
        %v1066 = vld [vmem:[%s1057 + $0x40] sm:$0xff]
        %v1067 = vld [vmem:[%s1057 + $0x48] sm:$0xff]
        %v1068 = vld [vmem:[%s1057 + $0x50] sm:$0xff]
        %v1069 = vld [vmem:[%s1057 + $0x58] sm:$0xff]
        %v1070 = vld [vmem:[%s1057 + $0x60] sm:$0xff]
        %v1071 = vld [vmem:[%s1057 + $0x68] sm:$0xff]
        %v1072 = vld [vmem:[%s1057 + $0x70] sm:$0xff]
        %v1073 = vld [vmem:[%s1057 + $0x78] sm:$0xff]
        %v1074 = vld [vmem:[%s1057 + $0x80] sm:$0xff]
        %v1075 = vld [vmem:[%s1057 + $0x88] sm:$0xff]
        %v1076 = vld [vmem:[%s1057 + $0x90] sm:$0xff]
        %v1077 = vld [vmem:[%s1057 + $0x98] sm:$0xff]
        %v1078 = vld [vmem:[%s1057 + $0xa0] sm:$0xff]
        %v1079 = vld [vmem:[%s1057 + $0xa8] sm:$0xff]
        %v1080 = vld [vmem:[%s1057 + $0xb0] sm:$0xff]
        %v1081 = vld [vmem:[%s1057 + $0xb8] sm:$0xff]
        %v1082 = vld [vmem:[%s1057 + $0xc0] sm:$0xff]
        %v1083 = vld [vmem:[%s1057 + $0xc8] sm:$0xff]
        %v1084 = vld [vmem:[%s1057 + $0xd0] sm:$0xff]
        %v1085 = vld [vmem:[%s1057 + $0xd8] sm:$0xff]
        %v1086 = vld [vmem:[%s1057 + $0xe0] sm:$0xff]
        %v1087 = vld [vmem:[%s1057 + $0xe8] sm:$0xff]
        %v1088 = vld [vmem:[%s1057 + $0xf0] sm:$0xff]
        %v1089 = vld [vmem:[%s1057 + $0xf8] sm:$0xff]
        %v1090 = vld [vmem:[%s1057 + $0x100] sm:$0xff]
        %v1091 = vld [vmem:[%s1057 + $0x108] sm:$0xff]
        %s1092 = scalar_lea.vmem %s1, 3
        %v1093 = vld [vmem:[%s1092] sm:$0x1]
        %1095 = vset.pattern.permute.xlu0 0
        %1096 = vperm.xlu0 %1095, %v1058
        %v1097 = vpop.permute.xlu0 %1096
        %1100 = vset.pattern.permute.xlu0 0
        %1101 = vperm.xlu0 %1100, %v1059
        %v1102 = vpop.permute.xlu0 %1101
        %1105 = vset.pattern.permute.xlu0 0
        %1106 = vperm.xlu0 %1105, %v1060
        %v1107 = vpop.permute.xlu0 %1106
        %1110 = vset.pattern.permute.xlu0 0
        %1111 = vperm.xlu0 %1110, %v1061
        %v1112 = vpop.permute.xlu0 %1111
        %1115 = vset.pattern.permute.xlu0 0
        %1116 = vperm.xlu0 %1115, %v1062
        %v1117 = vpop.permute.xlu0 %1116
        %1120 = vset.pattern.permute.xlu0 0
        %1121 = vperm.xlu0 %1120, %v1063
        %v1122 = vpop.permute.xlu0 %1121
        %1125 = vset.pattern.permute.xlu0 0
        %1126 = vperm.xlu0 %1125, %v1064
        %v1127 = vpop.permute.xlu0 %1126
        %1130 = vset.pattern.permute.xlu0 0
        %1131 = vperm.xlu0 %1130, %v1065
        %v1132 = vpop.permute.xlu0 %1131
        %1135 = vset.pattern.permute.xlu0 0
        %1136 = vperm.xlu0 %1135, %v1066
        %v1137 = vpop.permute.xlu0 %1136
        %1140 = vset.pattern.permute.xlu0 0
        %1141 = vperm.xlu0 %1140, %v1067
        %v1142 = vpop.permute.xlu0 %1141
        %1145 = vset.pattern.permute.xlu0 0
        %1146 = vperm.xlu0 %1145, %v1068
        %v1147 = vpop.permute.xlu0 %1146
        %1150 = vset.pattern.permute.xlu0 0
        %1151 = vperm.xlu0 %1150, %v1069
        %v1152 = vpop.permute.xlu0 %1151
        %1155 = vset.pattern.permute.xlu0 0
        %1156 = vperm.xlu0 %1155, %v1070
        %v1157 = vpop.permute.xlu0 %1156
        %1160 = vset.pattern.permute.xlu0 0
        %1161 = vperm.xlu0 %1160, %v1071
        %v1162 = vpop.permute.xlu0 %1161
        %1165 = vset.pattern.permute.xlu0 0
        %1166 = vperm.xlu0 %1165, %v1072
        %v1167 = vpop.permute.xlu0 %1166
        %1170 = vset.pattern.permute.xlu0 0
        %1171 = vperm.xlu0 %1170, %v1073
        %v1172 = vpop.permute.xlu0 %1171
        %1175 = vset.pattern.permute.xlu0 0
        %1176 = vperm.xlu0 %1175, %v1074
        %v1177 = vpop.permute.xlu0 %1176
        %1180 = vset.pattern.permute.xlu0 0
        %1181 = vperm.xlu0 %1180, %v1075
        %v1182 = vpop.permute.xlu0 %1181
        %1185 = vset.pattern.permute.xlu0 0
        %1186 = vperm.xlu0 %1185, %v1076
        %v1187 = vpop.permute.xlu0 %1186
        %1190 = vset.pattern.permute.xlu0 0
        %1191 = vperm.xlu0 %1190, %v1077
        %v1192 = vpop.permute.xlu0 %1191
        %1195 = vset.pattern.permute.xlu0 0
        %1196 = vperm.xlu0 %1195, %v1078
        %v1197 = vpop.permute.xlu0 %1196
        %1200 = vset.pattern.permute.xlu0 0
        %1201 = vperm.xlu0 %1200, %v1079
        %v1202 = vpop.permute.xlu0 %1201
        %1205 = vset.pattern.permute.xlu0 0
        %1206 = vperm.xlu0 %1205, %v1080
        %v1207 = vpop.permute.xlu0 %1206
        %1210 = vset.pattern.permute.xlu0 0
        %1211 = vperm.xlu0 %1210, %v1081
        %v1212 = vpop.permute.xlu0 %1211
        %1215 = vset.pattern.permute.xlu0 0
        %1216 = vperm.xlu0 %1215, %v1082
        %v1217 = vpop.permute.xlu0 %1216
        %1220 = vset.pattern.permute.xlu0 0
        %1221 = vperm.xlu0 %1220, %v1083
        %v1222 = vpop.permute.xlu0 %1221
        %1225 = vset.pattern.permute.xlu0 0
        %1226 = vperm.xlu0 %1225, %v1084
        %v1227 = vpop.permute.xlu0 %1226
        %1230 = vset.pattern.permute.xlu0 0
        %1231 = vperm.xlu0 %1230, %v1085
        %v1232 = vpop.permute.xlu0 %1231
        %1235 = vset.pattern.permute.xlu0 0
        %1236 = vperm.xlu0 %1235, %v1086
        %v1237 = vpop.permute.xlu0 %1236
        %1240 = vset.pattern.permute.xlu0 0
        %1241 = vperm.xlu0 %1240, %v1087
        %v1242 = vpop.permute.xlu0 %1241
        %1245 = vset.pattern.permute.xlu0 0
        %1246 = vperm.xlu0 %1245, %v1088
        %v1247 = vpop.permute.xlu0 %1246
        %1250 = vset.pattern.permute.xlu0 0
        %1251 = vperm.xlu0 %1250, %v1089
        %v1252 = vpop.permute.xlu0 %1251
        %1255 = vset.pattern.permute.xlu0 0
        %1256 = vperm.xlu0 %1255, %v1090
        %v1257 = vpop.permute.xlu0 %1256
        %1260 = vset.pattern.permute.xlu0 0
        %1261 = vperm.xlu0 %1260, %v1091
        %v1262 = vpop.permute.xlu0 %1261
        %v1265 = vlaneseq
        %v1266 = vshrl.u32 %v1265, 7
        %v1267 = vsub.s32 0, %v1266
        %v1268 = vrot.slane %v1093, %v1267
        %v1270 = vmul.f32 %v1097, %v1268
        %v1271 = vmul.f32 %v1102, %v1268
        %v1272 = vmul.f32 %v1107, %v1268
        %v1273 = vmul.f32 %v1112, %v1268
        %v1274 = vmul.f32 %v1117, %v1268
        %v1275 = vmul.f32 %v1122, %v1268
        %v1276 = vmul.f32 %v1127, %v1268
        %v1277 = vmul.f32 %v1132, %v1268
        %v1278 = vmul.f32 %v1137, %v1268
        %v1279 = vmul.f32 %v1142, %v1268
        %v1280 = vmul.f32 %v1147, %v1268
        %v1281 = vmul.f32 %v1152, %v1268
        %v1282 = vmul.f32 %v1157, %v1268
        %v1283 = vmul.f32 %v1162, %v1268
        %v1284 = vmul.f32 %v1167, %v1268
        %v1285 = vmul.f32 %v1172, %v1268
        %v1286 = vmul.f32 %v1177, %v1268
        %v1287 = vmul.f32 %v1182, %v1268
        %v1288 = vmul.f32 %v1187, %v1268
        %v1289 = vmul.f32 %v1192, %v1268
        %v1290 = vmul.f32 %v1197, %v1268
        %v1291 = vmul.f32 %v1202, %v1268
        %v1292 = vmul.f32 %v1207, %v1268
        %v1293 = vmul.f32 %v1212, %v1268
        %v1294 = vmul.f32 %v1217, %v1268
        %v1295 = vmul.f32 %v1222, %v1268
        %v1296 = vmul.f32 %v1227, %v1268
        %v1297 = vmul.f32 %v1232, %v1268
        %v1298 = vmul.f32 %v1237, %v1268
        %v1299 = vmul.f32 %v1242, %v1268
        %v1300 = vmul.f32 %v1247, %v1268
        %v1301 = vmul.f32 %v1252, %v1268
        %v1302 = vmul.f32 %v1257, %v1268
        %v1303 = vmul.f32 %v1262, %v1268
        %v1304 = vadd.f32 %v1022, %v1270
        %v1305 = vadd.f32 %v1023, %v1271
        %v1306 = vadd.f32 %v1024, %v1272
        %v1307 = vadd.f32 %v1025, %v1273
        %v1308 = vadd.f32 %v1026, %v1274
        %v1309 = vadd.f32 %v1027, %v1275
        %v1310 = vadd.f32 %v1028, %v1276
        %v1311 = vadd.f32 %v1029, %v1277
        %v1312 = vadd.f32 %v1030, %v1278
        %v1313 = vadd.f32 %v1031, %v1279
        %v1314 = vadd.f32 %v1032, %v1280
        %v1315 = vadd.f32 %v1033, %v1281
        %v1316 = vadd.f32 %v1034, %v1282
        %v1317 = vadd.f32 %v1035, %v1283
        %v1318 = vadd.f32 %v1036, %v1284
        %v1319 = vadd.f32 %v1037, %v1285
        %v1320 = vadd.f32 %v1038, %v1286
        %v1321 = vadd.f32 %v1039, %v1287
        %v1322 = vadd.f32 %v1040, %v1288
        %v1323 = vadd.f32 %v1041, %v1289
        %v1324 = vadd.f32 %v1042, %v1290
        %v1325 = vadd.f32 %v1043, %v1291
        %v1326 = vadd.f32 %v1044, %v1292
        %v1327 = vadd.f32 %v1045, %v1293
        %v1328 = vadd.f32 %v1046, %v1294
        %v1329 = vadd.f32 %v1047, %v1295
        %v1330 = vadd.f32 %v1048, %v1296
        %v1331 = vadd.f32 %v1049, %v1297
        %v1332 = vadd.f32 %v1050, %v1298
        %v1333 = vadd.f32 %v1051, %v1299
        %v1334 = vadd.f32 %v1052, %v1300
        %v1335 = vadd.f32 %v1053, %v1301
        %v1336 = vadd.f32 %v1054, %v1302
        %v1337 = vadd.f32 %v1055, %v1303
        %s1338 = sadd.s32 %s211, 35
        %s1339 = scalar_lea.vmem %s209, %s1338
        %v1340 = vld [vmem:[%s1339] sm:$0xff]
        %v1341 = vld [vmem:[%s1339 + $0x8] sm:$0xff]
        %v1342 = vld [vmem:[%s1339 + $0x10] sm:$0xff]
        %v1343 = vld [vmem:[%s1339 + $0x18] sm:$0xff]
        %v1344 = vld [vmem:[%s1339 + $0x20] sm:$0xff]
        %v1345 = vld [vmem:[%s1339 + $0x28] sm:$0xff]
        %v1346 = vld [vmem:[%s1339 + $0x30] sm:$0xff]
        %v1347 = vld [vmem:[%s1339 + $0x38] sm:$0xff]
        %v1348 = vld [vmem:[%s1339 + $0x40] sm:$0xff]
        %v1349 = vld [vmem:[%s1339 + $0x48] sm:$0xff]
        %v1350 = vld [vmem:[%s1339 + $0x50] sm:$0xff]
        %v1351 = vld [vmem:[%s1339 + $0x58] sm:$0xff]
        %v1352 = vld [vmem:[%s1339 + $0x60] sm:$0xff]
        %v1353 = vld [vmem:[%s1339 + $0x68] sm:$0xff]
        %v1354 = vld [vmem:[%s1339 + $0x70] sm:$0xff]
        %v1355 = vld [vmem:[%s1339 + $0x78] sm:$0xff]
        %v1356 = vld [vmem:[%s1339 + $0x80] sm:$0xff]
        %v1357 = vld [vmem:[%s1339 + $0x88] sm:$0xff]
        %v1358 = vld [vmem:[%s1339 + $0x90] sm:$0xff]
        %v1359 = vld [vmem:[%s1339 + $0x98] sm:$0xff]
        %v1360 = vld [vmem:[%s1339 + $0xa0] sm:$0xff]
        %v1361 = vld [vmem:[%s1339 + $0xa8] sm:$0xff]
        %v1362 = vld [vmem:[%s1339 + $0xb0] sm:$0xff]
        %v1363 = vld [vmem:[%s1339 + $0xb8] sm:$0xff]
        %v1364 = vld [vmem:[%s1339 + $0xc0] sm:$0xff]
        %v1365 = vld [vmem:[%s1339 + $0xc8] sm:$0xff]
        %v1366 = vld [vmem:[%s1339 + $0xd0] sm:$0xff]
        %v1367 = vld [vmem:[%s1339 + $0xd8] sm:$0xff]
        %v1368 = vld [vmem:[%s1339 + $0xe0] sm:$0xff]
        %v1369 = vld [vmem:[%s1339 + $0xe8] sm:$0xff]
        %v1370 = vld [vmem:[%s1339 + $0xf0] sm:$0xff]
        %v1371 = vld [vmem:[%s1339 + $0xf8] sm:$0xff]
        %v1372 = vld [vmem:[%s1339 + $0x100] sm:$0xff]
        %v1373 = vld [vmem:[%s1339 + $0x108] sm:$0xff]
        %s1374 = scalar_lea.vmem %s1, 4
        %v1375 = vld [vmem:[%s1374] sm:$0x1]
        %1377 = vset.pattern.permute.xlu0 0
        %1378 = vperm.xlu0 %1377, %v1340
        %v1379 = vpop.permute.xlu0 %1378
        %1382 = vset.pattern.permute.xlu0 0
        %1383 = vperm.xlu0 %1382, %v1341
        %v1384 = vpop.permute.xlu0 %1383
        %1387 = vset.pattern.permute.xlu0 0
        %1388 = vperm.xlu0 %1387, %v1342
        %v1389 = vpop.permute.xlu0 %1388
        %1392 = vset.pattern.permute.xlu0 0
        %1393 = vperm.xlu0 %1392, %v1343
        %v1394 = vpop.permute.xlu0 %1393
        %1397 = vset.pattern.permute.xlu0 0
        %1398 = vperm.xlu0 %1397, %v1344
        %v1399 = vpop.permute.xlu0 %1398
        %1402 = vset.pattern.permute.xlu0 0
        %1403 = vperm.xlu0 %1402, %v1345
        %v1404 = vpop.permute.xlu0 %1403
        %1407 = vset.pattern.permute.xlu0 0
        %1408 = vperm.xlu0 %1407, %v1346
        %v1409 = vpop.permute.xlu0 %1408
        %1412 = vset.pattern.permute.xlu0 0
        %1413 = vperm.xlu0 %1412, %v1347
        %v1414 = vpop.permute.xlu0 %1413
        %1417 = vset.pattern.permute.xlu0 0
        %1418 = vperm.xlu0 %1417, %v1348
        %v1419 = vpop.permute.xlu0 %1418
        %1422 = vset.pattern.permute.xlu0 0
        %1423 = vperm.xlu0 %1422, %v1349
        %v1424 = vpop.permute.xlu0 %1423
        %1427 = vset.pattern.permute.xlu0 0
        %1428 = vperm.xlu0 %1427, %v1350
        %v1429 = vpop.permute.xlu0 %1428
        %1432 = vset.pattern.permute.xlu0 0
        %1433 = vperm.xlu0 %1432, %v1351
        %v1434 = vpop.permute.xlu0 %1433
        %1437 = vset.pattern.permute.xlu0 0
        %1438 = vperm.xlu0 %1437, %v1352
        %v1439 = vpop.permute.xlu0 %1438
        %1442 = vset.pattern.permute.xlu0 0
        %1443 = vperm.xlu0 %1442, %v1353
        %v1444 = vpop.permute.xlu0 %1443
        %1447 = vset.pattern.permute.xlu0 0
        %1448 = vperm.xlu0 %1447, %v1354
        %v1449 = vpop.permute.xlu0 %1448
        %1452 = vset.pattern.permute.xlu0 0
        %1453 = vperm.xlu0 %1452, %v1355
        %v1454 = vpop.permute.xlu0 %1453
        %1457 = vset.pattern.permute.xlu0 0
        %1458 = vperm.xlu0 %1457, %v1356
        %v1459 = vpop.permute.xlu0 %1458
        %1462 = vset.pattern.permute.xlu0 0
        %1463 = vperm.xlu0 %1462, %v1357
        %v1464 = vpop.permute.xlu0 %1463
        %1467 = vset.pattern.permute.xlu0 0
        %1468 = vperm.xlu0 %1467, %v1358
        %v1469 = vpop.permute.xlu0 %1468
        %1472 = vset.pattern.permute.xlu0 0
        %1473 = vperm.xlu0 %1472, %v1359
        %v1474 = vpop.permute.xlu0 %1473
        %1477 = vset.pattern.permute.xlu0 0
        %1478 = vperm.xlu0 %1477, %v1360
        %v1479 = vpop.permute.xlu0 %1478
        %1482 = vset.pattern.permute.xlu0 0
        %1483 = vperm.xlu0 %1482, %v1361
        %v1484 = vpop.permute.xlu0 %1483
        %1487 = vset.pattern.permute.xlu0 0
        %1488 = vperm.xlu0 %1487, %v1362
        %v1489 = vpop.permute.xlu0 %1488
        %1492 = vset.pattern.permute.xlu0 0
        %1493 = vperm.xlu0 %1492, %v1363
        %v1494 = vpop.permute.xlu0 %1493
        %1497 = vset.pattern.permute.xlu0 0
        %1498 = vperm.xlu0 %1497, %v1364
        %v1499 = vpop.permute.xlu0 %1498
        %1502 = vset.pattern.permute.xlu0 0
        %1503 = vperm.xlu0 %1502, %v1365
        %v1504 = vpop.permute.xlu0 %1503
        %1507 = vset.pattern.permute.xlu0 0
        %1508 = vperm.xlu0 %1507, %v1366
        %v1509 = vpop.permute.xlu0 %1508
        %1512 = vset.pattern.permute.xlu0 0
        %1513 = vperm.xlu0 %1512, %v1367
        %v1514 = vpop.permute.xlu0 %1513
        %1517 = vset.pattern.permute.xlu0 0
        %1518 = vperm.xlu0 %1517, %v1368
        %v1519 = vpop.permute.xlu0 %1518
        %1522 = vset.pattern.permute.xlu0 0
        %1523 = vperm.xlu0 %1522, %v1369
        %v1524 = vpop.permute.xlu0 %1523
        %1527 = vset.pattern.permute.xlu0 0
        %1528 = vperm.xlu0 %1527, %v1370
        %v1529 = vpop.permute.xlu0 %1528
        %1532 = vset.pattern.permute.xlu0 0
        %1533 = vperm.xlu0 %1532, %v1371
        %v1534 = vpop.permute.xlu0 %1533
        %1537 = vset.pattern.permute.xlu0 0
        %1538 = vperm.xlu0 %1537, %v1372
        %v1539 = vpop.permute.xlu0 %1538
        %1542 = vset.pattern.permute.xlu0 0
        %1543 = vperm.xlu0 %1542, %v1373
        %v1544 = vpop.permute.xlu0 %1543
        %v1547 = vlaneseq
        %v1548 = vshrl.u32 %v1547, 7
        %v1549 = vsub.s32 0, %v1548
        %v1550 = vrot.slane %v1375, %v1549
        %v1552 = vmul.f32 %v1379, %v1550
        %v1553 = vmul.f32 %v1384, %v1550
        %v1554 = vmul.f32 %v1389, %v1550
        %v1555 = vmul.f32 %v1394, %v1550
        %v1556 = vmul.f32 %v1399, %v1550
        %v1557 = vmul.f32 %v1404, %v1550
        %v1558 = vmul.f32 %v1409, %v1550
        %v1559 = vmul.f32 %v1414, %v1550
        %v1560 = vmul.f32 %v1419, %v1550
        %v1561 = vmul.f32 %v1424, %v1550
        %v1562 = vmul.f32 %v1429, %v1550
        %v1563 = vmul.f32 %v1434, %v1550
        %v1564 = vmul.f32 %v1439, %v1550
        %v1565 = vmul.f32 %v1444, %v1550
        %v1566 = vmul.f32 %v1449, %v1550
        %v1567 = vmul.f32 %v1454, %v1550
        %v1568 = vmul.f32 %v1459, %v1550
        %v1569 = vmul.f32 %v1464, %v1550
        %v1570 = vmul.f32 %v1469, %v1550
        %v1571 = vmul.f32 %v1474, %v1550
        %v1572 = vmul.f32 %v1479, %v1550
        %v1573 = vmul.f32 %v1484, %v1550
        %v1574 = vmul.f32 %v1489, %v1550
        %v1575 = vmul.f32 %v1494, %v1550
        %v1576 = vmul.f32 %v1499, %v1550
        %v1577 = vmul.f32 %v1504, %v1550
        %v1578 = vmul.f32 %v1509, %v1550
        %v1579 = vmul.f32 %v1514, %v1550
        %v1580 = vmul.f32 %v1519, %v1550
        %v1581 = vmul.f32 %v1524, %v1550
        %v1582 = vmul.f32 %v1529, %v1550
        %v1583 = vmul.f32 %v1534, %v1550
        %v1584 = vmul.f32 %v1539, %v1550
        %v1585 = vmul.f32 %v1544, %v1550
        %v1586 = vadd.f32 %v1304, %v1552
        %v1587 = vadd.f32 %v1305, %v1553
        %v1588 = vadd.f32 %v1306, %v1554
        %v1589 = vadd.f32 %v1307, %v1555
        %v1590 = vadd.f32 %v1308, %v1556
        %v1591 = vadd.f32 %v1309, %v1557
        %v1592 = vadd.f32 %v1310, %v1558
        %v1593 = vadd.f32 %v1311, %v1559
        %v1594 = vadd.f32 %v1312, %v1560
        %v1595 = vadd.f32 %v1313, %v1561
        %v1596 = vadd.f32 %v1314, %v1562
        %v1597 = vadd.f32 %v1315, %v1563
        %v1598 = vadd.f32 %v1316, %v1564
        %v1599 = vadd.f32 %v1317, %v1565
        %v1600 = vadd.f32 %v1318, %v1566
        %v1601 = vadd.f32 %v1319, %v1567
        %v1602 = vadd.f32 %v1320, %v1568
        %v1603 = vadd.f32 %v1321, %v1569
        %v1604 = vadd.f32 %v1322, %v1570
        %v1605 = vadd.f32 %v1323, %v1571
        %v1606 = vadd.f32 %v1324, %v1572
        %v1607 = vadd.f32 %v1325, %v1573
        %v1608 = vadd.f32 %v1326, %v1574
        %v1609 = vadd.f32 %v1327, %v1575
        %v1610 = vadd.f32 %v1328, %v1576
        %v1611 = vadd.f32 %v1329, %v1577
        %v1612 = vadd.f32 %v1330, %v1578
        %v1613 = vadd.f32 %v1331, %v1579
        %v1614 = vadd.f32 %v1332, %v1580
        %v1615 = vadd.f32 %v1333, %v1581
        %v1616 = vadd.f32 %v1334, %v1582
        %v1617 = vadd.f32 %v1335, %v1583
        %v1618 = vadd.f32 %v1336, %v1584
        %v1619 = vadd.f32 %v1337, %v1585
        %s1620 = sadd.s32 %s211, 36
        %s1621 = scalar_lea.vmem %s209, %s1620
        %v1622 = vld [vmem:[%s1621] sm:$0xff]
        %v1623 = vld [vmem:[%s1621 + $0x8] sm:$0xff]
        %v1624 = vld [vmem:[%s1621 + $0x10] sm:$0xff]
        %v1625 = vld [vmem:[%s1621 + $0x18] sm:$0xff]
        %v1626 = vld [vmem:[%s1621 + $0x20] sm:$0xff]
        %v1627 = vld [vmem:[%s1621 + $0x28] sm:$0xff]
        %v1628 = vld [vmem:[%s1621 + $0x30] sm:$0xff]
        %v1629 = vld [vmem:[%s1621 + $0x38] sm:$0xff]
        %v1630 = vld [vmem:[%s1621 + $0x40] sm:$0xff]
        %v1631 = vld [vmem:[%s1621 + $0x48] sm:$0xff]
        %v1632 = vld [vmem:[%s1621 + $0x50] sm:$0xff]
        %v1633 = vld [vmem:[%s1621 + $0x58] sm:$0xff]
        %v1634 = vld [vmem:[%s1621 + $0x60] sm:$0xff]
        %v1635 = vld [vmem:[%s1621 + $0x68] sm:$0xff]
        %v1636 = vld [vmem:[%s1621 + $0x70] sm:$0xff]
        %v1637 = vld [vmem:[%s1621 + $0x78] sm:$0xff]
        %v1638 = vld [vmem:[%s1621 + $0x80] sm:$0xff]
        %v1639 = vld [vmem:[%s1621 + $0x88] sm:$0xff]
        %v1640 = vld [vmem:[%s1621 + $0x90] sm:$0xff]
        %v1641 = vld [vmem:[%s1621 + $0x98] sm:$0xff]
        %v1642 = vld [vmem:[%s1621 + $0xa0] sm:$0xff]
        %v1643 = vld [vmem:[%s1621 + $0xa8] sm:$0xff]
        %v1644 = vld [vmem:[%s1621 + $0xb0] sm:$0xff]
        %v1645 = vld [vmem:[%s1621 + $0xb8] sm:$0xff]
        %v1646 = vld [vmem:[%s1621 + $0xc0] sm:$0xff]
        %v1647 = vld [vmem:[%s1621 + $0xc8] sm:$0xff]
        %v1648 = vld [vmem:[%s1621 + $0xd0] sm:$0xff]
        %v1649 = vld [vmem:[%s1621 + $0xd8] sm:$0xff]
        %v1650 = vld [vmem:[%s1621 + $0xe0] sm:$0xff]
        %v1651 = vld [vmem:[%s1621 + $0xe8] sm:$0xff]
        %v1652 = vld [vmem:[%s1621 + $0xf0] sm:$0xff]
        %v1653 = vld [vmem:[%s1621 + $0xf8] sm:$0xff]
        %v1654 = vld [vmem:[%s1621 + $0x100] sm:$0xff]
        %v1655 = vld [vmem:[%s1621 + $0x108] sm:$0xff]
        %s1656 = scalar_lea.vmem %s1, 5
        %v1657 = vld [vmem:[%s1656] sm:$0x1]
        %1659 = vset.pattern.permute.xlu0 0
        %1660 = vperm.xlu0 %1659, %v1622
        %v1661 = vpop.permute.xlu0 %1660
        %1664 = vset.pattern.permute.xlu0 0
        %1665 = vperm.xlu0 %1664, %v1623
        %v1666 = vpop.permute.xlu0 %1665
        %1669 = vset.pattern.permute.xlu0 0
        %1670 = vperm.xlu0 %1669, %v1624
        %v1671 = vpop.permute.xlu0 %1670
        %1674 = vset.pattern.permute.xlu0 0
        %1675 = vperm.xlu0 %1674, %v1625
        %v1676 = vpop.permute.xlu0 %1675
        %1679 = vset.pattern.permute.xlu0 0
        %1680 = vperm.xlu0 %1679, %v1626
        %v1681 = vpop.permute.xlu0 %1680
        %1684 = vset.pattern.permute.xlu0 0
        %1685 = vperm.xlu0 %1684, %v1627
        %v1686 = vpop.permute.xlu0 %1685
        %1689 = vset.pattern.permute.xlu0 0
        %1690 = vperm.xlu0 %1689, %v1628
        %v1691 = vpop.permute.xlu0 %1690
        %1694 = vset.pattern.permute.xlu0 0
        %1695 = vperm.xlu0 %1694, %v1629
        %v1696 = vpop.permute.xlu0 %1695
        %1699 = vset.pattern.permute.xlu0 0
        %1700 = vperm.xlu0 %1699, %v1630
        %v1701 = vpop.permute.xlu0 %1700
        %1704 = vset.pattern.permute.xlu0 0
        %1705 = vperm.xlu0 %1704, %v1631
        %v1706 = vpop.permute.xlu0 %1705
        %1709 = vset.pattern.permute.xlu0 0
        %1710 = vperm.xlu0 %1709, %v1632
        %v1711 = vpop.permute.xlu0 %1710
        %1714 = vset.pattern.permute.xlu0 0
        %1715 = vperm.xlu0 %1714, %v1633
        %v1716 = vpop.permute.xlu0 %1715
        %1719 = vset.pattern.permute.xlu0 0
        %1720 = vperm.xlu0 %1719, %v1634
        %v1721 = vpop.permute.xlu0 %1720
        %1724 = vset.pattern.permute.xlu0 0
        %1725 = vperm.xlu0 %1724, %v1635
        %v1726 = vpop.permute.xlu0 %1725
        %1729 = vset.pattern.permute.xlu0 0
        %1730 = vperm.xlu0 %1729, %v1636
        %v1731 = vpop.permute.xlu0 %1730
        %1734 = vset.pattern.permute.xlu0 0
        %1735 = vperm.xlu0 %1734, %v1637
        %v1736 = vpop.permute.xlu0 %1735
        %1739 = vset.pattern.permute.xlu0 0
        %1740 = vperm.xlu0 %1739, %v1638
        %v1741 = vpop.permute.xlu0 %1740
        %1744 = vset.pattern.permute.xlu0 0
        %1745 = vperm.xlu0 %1744, %v1639
        %v1746 = vpop.permute.xlu0 %1745
        %1749 = vset.pattern.permute.xlu0 0
        %1750 = vperm.xlu0 %1749, %v1640
        %v1751 = vpop.permute.xlu0 %1750
        %1754 = vset.pattern.permute.xlu0 0
        %1755 = vperm.xlu0 %1754, %v1641
        %v1756 = vpop.permute.xlu0 %1755
        %1759 = vset.pattern.permute.xlu0 0
        %1760 = vperm.xlu0 %1759, %v1642
        %v1761 = vpop.permute.xlu0 %1760
        %1764 = vset.pattern.permute.xlu0 0
        %1765 = vperm.xlu0 %1764, %v1643
        %v1766 = vpop.permute.xlu0 %1765
        %1769 = vset.pattern.permute.xlu0 0
        %1770 = vperm.xlu0 %1769, %v1644
        %v1771 = vpop.permute.xlu0 %1770
        %1774 = vset.pattern.permute.xlu0 0
        %1775 = vperm.xlu0 %1774, %v1645
        %v1776 = vpop.permute.xlu0 %1775
        %1779 = vset.pattern.permute.xlu0 0
        %1780 = vperm.xlu0 %1779, %v1646
        %v1781 = vpop.permute.xlu0 %1780
        %1784 = vset.pattern.permute.xlu0 0
        %1785 = vperm.xlu0 %1784, %v1647
        %v1786 = vpop.permute.xlu0 %1785
        %1789 = vset.pattern.permute.xlu0 0
        %1790 = vperm.xlu0 %1789, %v1648
        %v1791 = vpop.permute.xlu0 %1790
        %1794 = vset.pattern.permute.xlu0 0
        %1795 = vperm.xlu0 %1794, %v1649
        %v1796 = vpop.permute.xlu0 %1795
        %1799 = vset.pattern.permute.xlu0 0
        %1800 = vperm.xlu0 %1799, %v1650
        %v1801 = vpop.permute.xlu0 %1800
        %1804 = vset.pattern.permute.xlu0 0
        %1805 = vperm.xlu0 %1804, %v1651
        %v1806 = vpop.permute.xlu0 %1805
        %1809 = vset.pattern.permute.xlu0 0
        %1810 = vperm.xlu0 %1809, %v1652
        %v1811 = vpop.permute.xlu0 %1810
        %1814 = vset.pattern.permute.xlu0 0
        %1815 = vperm.xlu0 %1814, %v1653
        %v1816 = vpop.permute.xlu0 %1815
        %1819 = vset.pattern.permute.xlu0 0
        %1820 = vperm.xlu0 %1819, %v1654
        %v1821 = vpop.permute.xlu0 %1820
        %1824 = vset.pattern.permute.xlu0 0
        %1825 = vperm.xlu0 %1824, %v1655
        %v1826 = vpop.permute.xlu0 %1825
        %v1829 = vlaneseq
        %v1830 = vshrl.u32 %v1829, 7
        %v1831 = vsub.s32 0, %v1830
        %v1832 = vrot.slane %v1657, %v1831
        %v1834 = vmul.f32 %v1661, %v1832
        %v1835 = vmul.f32 %v1666, %v1832
        %v1836 = vmul.f32 %v1671, %v1832
        %v1837 = vmul.f32 %v1676, %v1832
        %v1838 = vmul.f32 %v1681, %v1832
        %v1839 = vmul.f32 %v1686, %v1832
        %v1840 = vmul.f32 %v1691, %v1832
        %v1841 = vmul.f32 %v1696, %v1832
        %v1842 = vmul.f32 %v1701, %v1832
        %v1843 = vmul.f32 %v1706, %v1832
        %v1844 = vmul.f32 %v1711, %v1832
        %v1845 = vmul.f32 %v1716, %v1832
        %v1846 = vmul.f32 %v1721, %v1832
        %v1847 = vmul.f32 %v1726, %v1832
        %v1848 = vmul.f32 %v1731, %v1832
        %v1849 = vmul.f32 %v1736, %v1832
        %v1850 = vmul.f32 %v1741, %v1832
        %v1851 = vmul.f32 %v1746, %v1832
        %v1852 = vmul.f32 %v1751, %v1832
        %v1853 = vmul.f32 %v1756, %v1832
        %v1854 = vmul.f32 %v1761, %v1832
        %v1855 = vmul.f32 %v1766, %v1832
        %v1856 = vmul.f32 %v1771, %v1832
        %v1857 = vmul.f32 %v1776, %v1832
        %v1858 = vmul.f32 %v1781, %v1832
        %v1859 = vmul.f32 %v1786, %v1832
        %v1860 = vmul.f32 %v1791, %v1832
        %v1861 = vmul.f32 %v1796, %v1832
        %v1862 = vmul.f32 %v1801, %v1832
        %v1863 = vmul.f32 %v1806, %v1832
        %v1864 = vmul.f32 %v1811, %v1832
        %v1865 = vmul.f32 %v1816, %v1832
        %v1866 = vmul.f32 %v1821, %v1832
        %v1867 = vmul.f32 %v1826, %v1832
        %v1868 = vadd.f32 %v1586, %v1834
        %v1869 = vadd.f32 %v1587, %v1835
        %v1870 = vadd.f32 %v1588, %v1836
        %v1871 = vadd.f32 %v1589, %v1837
        %v1872 = vadd.f32 %v1590, %v1838
        %v1873 = vadd.f32 %v1591, %v1839
        %v1874 = vadd.f32 %v1592, %v1840
        %v1875 = vadd.f32 %v1593, %v1841
        %v1876 = vadd.f32 %v1594, %v1842
        %v1877 = vadd.f32 %v1595, %v1843
        %v1878 = vadd.f32 %v1596, %v1844
        %v1879 = vadd.f32 %v1597, %v1845
        %v1880 = vadd.f32 %v1598, %v1846
        %v1881 = vadd.f32 %v1599, %v1847
        %v1882 = vadd.f32 %v1600, %v1848
        %v1883 = vadd.f32 %v1601, %v1849
        %v1884 = vadd.f32 %v1602, %v1850
        %v1885 = vadd.f32 %v1603, %v1851
        %v1886 = vadd.f32 %v1604, %v1852
        %v1887 = vadd.f32 %v1605, %v1853
        %v1888 = vadd.f32 %v1606, %v1854
        %v1889 = vadd.f32 %v1607, %v1855
        %v1890 = vadd.f32 %v1608, %v1856
        %v1891 = vadd.f32 %v1609, %v1857
        %v1892 = vadd.f32 %v1610, %v1858
        %v1893 = vadd.f32 %v1611, %v1859
        %v1894 = vadd.f32 %v1612, %v1860
        %v1895 = vadd.f32 %v1613, %v1861
        %v1896 = vadd.f32 %v1614, %v1862
        %v1897 = vadd.f32 %v1615, %v1863
        %v1898 = vadd.f32 %v1616, %v1864
        %v1899 = vadd.f32 %v1617, %v1865
        %v1900 = vadd.f32 %v1618, %v1866
        %v1901 = vadd.f32 %v1619, %v1867
        %s1902 = sadd.s32 %s211, 68
        %s1903 = scalar_lea.vmem %s209, %s1902
        %v1904 = vld [vmem:[%s1903] sm:$0xff]
        %v1905 = vld [vmem:[%s1903 + $0x8] sm:$0xff]
        %v1906 = vld [vmem:[%s1903 + $0x10] sm:$0xff]
        %v1907 = vld [vmem:[%s1903 + $0x18] sm:$0xff]
        %v1908 = vld [vmem:[%s1903 + $0x20] sm:$0xff]
        %v1909 = vld [vmem:[%s1903 + $0x28] sm:$0xff]
        %v1910 = vld [vmem:[%s1903 + $0x30] sm:$0xff]
        %v1911 = vld [vmem:[%s1903 + $0x38] sm:$0xff]
        %v1912 = vld [vmem:[%s1903 + $0x40] sm:$0xff]
        %v1913 = vld [vmem:[%s1903 + $0x48] sm:$0xff]
        %v1914 = vld [vmem:[%s1903 + $0x50] sm:$0xff]
        %v1915 = vld [vmem:[%s1903 + $0x58] sm:$0xff]
        %v1916 = vld [vmem:[%s1903 + $0x60] sm:$0xff]
        %v1917 = vld [vmem:[%s1903 + $0x68] sm:$0xff]
        %v1918 = vld [vmem:[%s1903 + $0x70] sm:$0xff]
        %v1919 = vld [vmem:[%s1903 + $0x78] sm:$0xff]
        %v1920 = vld [vmem:[%s1903 + $0x80] sm:$0xff]
        %v1921 = vld [vmem:[%s1903 + $0x88] sm:$0xff]
        %v1922 = vld [vmem:[%s1903 + $0x90] sm:$0xff]
        %v1923 = vld [vmem:[%s1903 + $0x98] sm:$0xff]
        %v1924 = vld [vmem:[%s1903 + $0xa0] sm:$0xff]
        %v1925 = vld [vmem:[%s1903 + $0xa8] sm:$0xff]
        %v1926 = vld [vmem:[%s1903 + $0xb0] sm:$0xff]
        %v1927 = vld [vmem:[%s1903 + $0xb8] sm:$0xff]
        %v1928 = vld [vmem:[%s1903 + $0xc0] sm:$0xff]
        %v1929 = vld [vmem:[%s1903 + $0xc8] sm:$0xff]
        %v1930 = vld [vmem:[%s1903 + $0xd0] sm:$0xff]
        %v1931 = vld [vmem:[%s1903 + $0xd8] sm:$0xff]
        %v1932 = vld [vmem:[%s1903 + $0xe0] sm:$0xff]
        %v1933 = vld [vmem:[%s1903 + $0xe8] sm:$0xff]
        %v1934 = vld [vmem:[%s1903 + $0xf0] sm:$0xff]
        %v1935 = vld [vmem:[%s1903 + $0xf8] sm:$0xff]
        %v1936 = vld [vmem:[%s1903 + $0x100] sm:$0xff]
        %v1937 = vld [vmem:[%s1903 + $0x108] sm:$0xff]
        %s1938 = scalar_lea.vmem %s1, 6
        %v1939 = vld [vmem:[%s1938] sm:$0x1]
        %1941 = vset.pattern.permute.xlu0 0
        %1942 = vperm.xlu0 %1941, %v1904
        %v1943 = vpop.permute.xlu0 %1942
        %1946 = vset.pattern.permute.xlu0 0
        %1947 = vperm.xlu0 %1946, %v1905
        %v1948 = vpop.permute.xlu0 %1947
        %1951 = vset.pattern.permute.xlu0 0
        %1952 = vperm.xlu0 %1951, %v1906
        %v1953 = vpop.permute.xlu0 %1952
        %1956 = vset.pattern.permute.xlu0 0
        %1957 = vperm.xlu0 %1956, %v1907
        %v1958 = vpop.permute.xlu0 %1957
        %1961 = vset.pattern.permute.xlu0 0
        %1962 = vperm.xlu0 %1961, %v1908
        %v1963 = vpop.permute.xlu0 %1962
        %1966 = vset.pattern.permute.xlu0 0
        %1967 = vperm.xlu0 %1966, %v1909
        %v1968 = vpop.permute.xlu0 %1967
        %1971 = vset.pattern.permute.xlu0 0
        %1972 = vperm.xlu0 %1971, %v1910
        %v1973 = vpop.permute.xlu0 %1972
        %1976 = vset.pattern.permute.xlu0 0
        %1977 = vperm.xlu0 %1976, %v1911
        %v1978 = vpop.permute.xlu0 %1977
        %1981 = vset.pattern.permute.xlu0 0
        %1982 = vperm.xlu0 %1981, %v1912
        %v1983 = vpop.permute.xlu0 %1982
        %1986 = vset.pattern.permute.xlu0 0
        %1987 = vperm.xlu0 %1986, %v1913
        %v1988 = vpop.permute.xlu0 %1987
        %1991 = vset.pattern.permute.xlu0 0
        %1992 = vperm.xlu0 %1991, %v1914
        %v1993 = vpop.permute.xlu0 %1992
        %1996 = vset.pattern.permute.xlu0 0
        %1997 = vperm.xlu0 %1996, %v1915
        %v1998 = vpop.permute.xlu0 %1997
        %2001 = vset.pattern.permute.xlu0 0
        %2002 = vperm.xlu0 %2001, %v1916
        %v2003 = vpop.permute.xlu0 %2002
        %2006 = vset.pattern.permute.xlu0 0
        %2007 = vperm.xlu0 %2006, %v1917
        %v2008 = vpop.permute.xlu0 %2007
        %2011 = vset.pattern.permute.xlu0 0
        %2012 = vperm.xlu0 %2011, %v1918
        %v2013 = vpop.permute.xlu0 %2012
        %2016 = vset.pattern.permute.xlu0 0
        %2017 = vperm.xlu0 %2016, %v1919
        %v2018 = vpop.permute.xlu0 %2017
        %2021 = vset.pattern.permute.xlu0 0
        %2022 = vperm.xlu0 %2021, %v1920
        %v2023 = vpop.permute.xlu0 %2022
        %2026 = vset.pattern.permute.xlu0 0
        %2027 = vperm.xlu0 %2026, %v1921
        %v2028 = vpop.permute.xlu0 %2027
        %2031 = vset.pattern.permute.xlu0 0
        %2032 = vperm.xlu0 %2031, %v1922
        %v2033 = vpop.permute.xlu0 %2032
        %2036 = vset.pattern.permute.xlu0 0
        %2037 = vperm.xlu0 %2036, %v1923
        %v2038 = vpop.permute.xlu0 %2037
        %2041 = vset.pattern.permute.xlu0 0
        %2042 = vperm.xlu0 %2041, %v1924
        %v2043 = vpop.permute.xlu0 %2042
        %2046 = vset.pattern.permute.xlu0 0
        %2047 = vperm.xlu0 %2046, %v1925
        %v2048 = vpop.permute.xlu0 %2047
        %2051 = vset.pattern.permute.xlu0 0
        %2052 = vperm.xlu0 %2051, %v1926
        %v2053 = vpop.permute.xlu0 %2052
        %2056 = vset.pattern.permute.xlu0 0
        %2057 = vperm.xlu0 %2056, %v1927
        %v2058 = vpop.permute.xlu0 %2057
        %2061 = vset.pattern.permute.xlu0 0
        %2062 = vperm.xlu0 %2061, %v1928
        %v2063 = vpop.permute.xlu0 %2062
        %2066 = vset.pattern.permute.xlu0 0
        %2067 = vperm.xlu0 %2066, %v1929
        %v2068 = vpop.permute.xlu0 %2067
        %2071 = vset.pattern.permute.xlu0 0
        %2072 = vperm.xlu0 %2071, %v1930
        %v2073 = vpop.permute.xlu0 %2072
        %2076 = vset.pattern.permute.xlu0 0
        %2077 = vperm.xlu0 %2076, %v1931
        %v2078 = vpop.permute.xlu0 %2077
        %2081 = vset.pattern.permute.xlu0 0
        %2082 = vperm.xlu0 %2081, %v1932
        %v2083 = vpop.permute.xlu0 %2082
        %2086 = vset.pattern.permute.xlu0 0
        %2087 = vperm.xlu0 %2086, %v1933
        %v2088 = vpop.permute.xlu0 %2087
        %2091 = vset.pattern.permute.xlu0 0
        %2092 = vperm.xlu0 %2091, %v1934
        %v2093 = vpop.permute.xlu0 %2092
        %2096 = vset.pattern.permute.xlu0 0
        %2097 = vperm.xlu0 %2096, %v1935
        %v2098 = vpop.permute.xlu0 %2097
        %2101 = vset.pattern.permute.xlu0 0
        %2102 = vperm.xlu0 %2101, %v1936
        %v2103 = vpop.permute.xlu0 %2102
        %2106 = vset.pattern.permute.xlu0 0
        %2107 = vperm.xlu0 %2106, %v1937
        %v2108 = vpop.permute.xlu0 %2107
        %v2111 = vlaneseq
        %v2112 = vshrl.u32 %v2111, 7
        %v2113 = vsub.s32 0, %v2112
        %v2114 = vrot.slane %v1939, %v2113
        %v2116 = vmul.f32 %v1943, %v2114
        %v2117 = vmul.f32 %v1948, %v2114
        %v2118 = vmul.f32 %v1953, %v2114
        %v2119 = vmul.f32 %v1958, %v2114
        %v2120 = vmul.f32 %v1963, %v2114
        %v2121 = vmul.f32 %v1968, %v2114
        %v2122 = vmul.f32 %v1973, %v2114
        %v2123 = vmul.f32 %v1978, %v2114
        %v2124 = vmul.f32 %v1983, %v2114
        %v2125 = vmul.f32 %v1988, %v2114
        %v2126 = vmul.f32 %v1993, %v2114
        %v2127 = vmul.f32 %v1998, %v2114
        %v2128 = vmul.f32 %v2003, %v2114
        %v2129 = vmul.f32 %v2008, %v2114
        %v2130 = vmul.f32 %v2013, %v2114
        %v2131 = vmul.f32 %v2018, %v2114
        %v2132 = vmul.f32 %v2023, %v2114
        %v2133 = vmul.f32 %v2028, %v2114
        %v2134 = vmul.f32 %v2033, %v2114
        %v2135 = vmul.f32 %v2038, %v2114
        %v2136 = vmul.f32 %v2043, %v2114
        %v2137 = vmul.f32 %v2048, %v2114
        %v2138 = vmul.f32 %v2053, %v2114
        %v2139 = vmul.f32 %v2058, %v2114
        %v2140 = vmul.f32 %v2063, %v2114
        %v2141 = vmul.f32 %v2068, %v2114
        %v2142 = vmul.f32 %v2073, %v2114
        %v2143 = vmul.f32 %v2078, %v2114
        %v2144 = vmul.f32 %v2083, %v2114
        %v2145 = vmul.f32 %v2088, %v2114
        %v2146 = vmul.f32 %v2093, %v2114
        %v2147 = vmul.f32 %v2098, %v2114
        %v2148 = vmul.f32 %v2103, %v2114
        %v2149 = vmul.f32 %v2108, %v2114
        %v2150 = vadd.f32 %v1868, %v2116
        %v2151 = vadd.f32 %v1869, %v2117
        %v2152 = vadd.f32 %v1870, %v2118
        %v2153 = vadd.f32 %v1871, %v2119
        %v2154 = vadd.f32 %v1872, %v2120
        %v2155 = vadd.f32 %v1873, %v2121
        %v2156 = vadd.f32 %v1874, %v2122
        %v2157 = vadd.f32 %v1875, %v2123
        %v2158 = vadd.f32 %v1876, %v2124
        %v2159 = vadd.f32 %v1877, %v2125
        %v2160 = vadd.f32 %v1878, %v2126
        %v2161 = vadd.f32 %v1879, %v2127
        %v2162 = vadd.f32 %v1880, %v2128
        %v2163 = vadd.f32 %v1881, %v2129
        %v2164 = vadd.f32 %v1882, %v2130
        %v2165 = vadd.f32 %v1883, %v2131
        %v2166 = vadd.f32 %v1884, %v2132
        %v2167 = vadd.f32 %v1885, %v2133
        %v2168 = vadd.f32 %v1886, %v2134
        %v2169 = vadd.f32 %v1887, %v2135
        %v2170 = vadd.f32 %v1888, %v2136
        %v2171 = vadd.f32 %v1889, %v2137
        %v2172 = vadd.f32 %v1890, %v2138
        %v2173 = vadd.f32 %v1891, %v2139
        %v2174 = vadd.f32 %v1892, %v2140
        %v2175 = vadd.f32 %v1893, %v2141
        %v2176 = vadd.f32 %v1894, %v2142
        %v2177 = vadd.f32 %v1895, %v2143
        %v2178 = vadd.f32 %v1896, %v2144
        %v2179 = vadd.f32 %v1897, %v2145
        %v2180 = vadd.f32 %v1898, %v2146
        %v2181 = vadd.f32 %v1899, %v2147
        %v2182 = vadd.f32 %v1900, %v2148
        %v2183 = vadd.f32 %v1901, %v2149
        %s2184 = sadd.s32 %s211, 69
        %s2185 = scalar_lea.vmem %s209, %s2184
        %v2186 = vld [vmem:[%s2185] sm:$0xff]
        %v2187 = vld [vmem:[%s2185 + $0x8] sm:$0xff]
        %v2188 = vld [vmem:[%s2185 + $0x10] sm:$0xff]
        %v2189 = vld [vmem:[%s2185 + $0x18] sm:$0xff]
        %v2190 = vld [vmem:[%s2185 + $0x20] sm:$0xff]
        %v2191 = vld [vmem:[%s2185 + $0x28] sm:$0xff]
        %v2192 = vld [vmem:[%s2185 + $0x30] sm:$0xff]
        %v2193 = vld [vmem:[%s2185 + $0x38] sm:$0xff]
        %v2194 = vld [vmem:[%s2185 + $0x40] sm:$0xff]
        %v2195 = vld [vmem:[%s2185 + $0x48] sm:$0xff]
        %v2196 = vld [vmem:[%s2185 + $0x50] sm:$0xff]
        %v2197 = vld [vmem:[%s2185 + $0x58] sm:$0xff]
        %v2198 = vld [vmem:[%s2185 + $0x60] sm:$0xff]
        %v2199 = vld [vmem:[%s2185 + $0x68] sm:$0xff]
        %v2200 = vld [vmem:[%s2185 + $0x70] sm:$0xff]
        %v2201 = vld [vmem:[%s2185 + $0x78] sm:$0xff]
        %v2202 = vld [vmem:[%s2185 + $0x80] sm:$0xff]
        %v2203 = vld [vmem:[%s2185 + $0x88] sm:$0xff]
        %v2204 = vld [vmem:[%s2185 + $0x90] sm:$0xff]
        %v2205 = vld [vmem:[%s2185 + $0x98] sm:$0xff]
        %v2206 = vld [vmem:[%s2185 + $0xa0] sm:$0xff]
        %v2207 = vld [vmem:[%s2185 + $0xa8] sm:$0xff]
        %v2208 = vld [vmem:[%s2185 + $0xb0] sm:$0xff]
        %v2209 = vld [vmem:[%s2185 + $0xb8] sm:$0xff]
        %v2210 = vld [vmem:[%s2185 + $0xc0] sm:$0xff]
        %v2211 = vld [vmem:[%s2185 + $0xc8] sm:$0xff]
        %v2212 = vld [vmem:[%s2185 + $0xd0] sm:$0xff]
        %v2213 = vld [vmem:[%s2185 + $0xd8] sm:$0xff]
        %v2214 = vld [vmem:[%s2185 + $0xe0] sm:$0xff]
        %v2215 = vld [vmem:[%s2185 + $0xe8] sm:$0xff]
        %v2216 = vld [vmem:[%s2185 + $0xf0] sm:$0xff]
        %v2217 = vld [vmem:[%s2185 + $0xf8] sm:$0xff]
        %v2218 = vld [vmem:[%s2185 + $0x100] sm:$0xff]
        %v2219 = vld [vmem:[%s2185 + $0x108] sm:$0xff]
        %s2220 = scalar_lea.vmem %s1, 7
        %v2221 = vld [vmem:[%s2220] sm:$0x1]
        %2223 = vset.pattern.permute.xlu0 0
        %2224 = vperm.xlu0 %2223, %v2186
        %v2225 = vpop.permute.xlu0 %2224
        %2228 = vset.pattern.permute.xlu0 0
        %2229 = vperm.xlu0 %2228, %v2187
        %v2230 = vpop.permute.xlu0 %2229
        %2233 = vset.pattern.permute.xlu0 0
        %2234 = vperm.xlu0 %2233, %v2188
        %v2235 = vpop.permute.xlu0 %2234
        %2238 = vset.pattern.permute.xlu0 0
        %2239 = vperm.xlu0 %2238, %v2189
        %v2240 = vpop.permute.xlu0 %2239
        %2243 = vset.pattern.permute.xlu0 0
        %2244 = vperm.xlu0 %2243, %v2190
        %v2245 = vpop.permute.xlu0 %2244
        %2248 = vset.pattern.permute.xlu0 0
        %2249 = vperm.xlu0 %2248, %v2191
        %v2250 = vpop.permute.xlu0 %2249
        %2253 = vset.pattern.permute.xlu0 0
        %2254 = vperm.xlu0 %2253, %v2192
        %v2255 = vpop.permute.xlu0 %2254
        %2258 = vset.pattern.permute.xlu0 0
        %2259 = vperm.xlu0 %2258, %v2193
        %v2260 = vpop.permute.xlu0 %2259
        %2263 = vset.pattern.permute.xlu0 0
        %2264 = vperm.xlu0 %2263, %v2194
        %v2265 = vpop.permute.xlu0 %2264
        %2268 = vset.pattern.permute.xlu0 0
        %2269 = vperm.xlu0 %2268, %v2195
        %v2270 = vpop.permute.xlu0 %2269
        %2273 = vset.pattern.permute.xlu0 0
        %2274 = vperm.xlu0 %2273, %v2196
        %v2275 = vpop.permute.xlu0 %2274
        %2278 = vset.pattern.permute.xlu0 0
        %2279 = vperm.xlu0 %2278, %v2197
        %v2280 = vpop.permute.xlu0 %2279
        %2283 = vset.pattern.permute.xlu0 0
        %2284 = vperm.xlu0 %2283, %v2198
        %v2285 = vpop.permute.xlu0 %2284
        %2288 = vset.pattern.permute.xlu0 0
        %2289 = vperm.xlu0 %2288, %v2199
        %v2290 = vpop.permute.xlu0 %2289
        %2293 = vset.pattern.permute.xlu0 0
        %2294 = vperm.xlu0 %2293, %v2200
        %v2295 = vpop.permute.xlu0 %2294
        %2298 = vset.pattern.permute.xlu0 0
        %2299 = vperm.xlu0 %2298, %v2201
        %v2300 = vpop.permute.xlu0 %2299
        %2303 = vset.pattern.permute.xlu0 0
        %2304 = vperm.xlu0 %2303, %v2202
        %v2305 = vpop.permute.xlu0 %2304
        %2308 = vset.pattern.permute.xlu0 0
        %2309 = vperm.xlu0 %2308, %v2203
        %v2310 = vpop.permute.xlu0 %2309
        %2313 = vset.pattern.permute.xlu0 0
        %2314 = vperm.xlu0 %2313, %v2204
        %v2315 = vpop.permute.xlu0 %2314
        %2318 = vset.pattern.permute.xlu0 0
        %2319 = vperm.xlu0 %2318, %v2205
        %v2320 = vpop.permute.xlu0 %2319
        %2323 = vset.pattern.permute.xlu0 0
        %2324 = vperm.xlu0 %2323, %v2206
        %v2325 = vpop.permute.xlu0 %2324
        %2328 = vset.pattern.permute.xlu0 0
        %2329 = vperm.xlu0 %2328, %v2207
        %v2330 = vpop.permute.xlu0 %2329
        %2333 = vset.pattern.permute.xlu0 0
        %2334 = vperm.xlu0 %2333, %v2208
        %v2335 = vpop.permute.xlu0 %2334
        %2338 = vset.pattern.permute.xlu0 0
        %2339 = vperm.xlu0 %2338, %v2209
        %v2340 = vpop.permute.xlu0 %2339
        %2343 = vset.pattern.permute.xlu0 0
        %2344 = vperm.xlu0 %2343, %v2210
        %v2345 = vpop.permute.xlu0 %2344
        %2348 = vset.pattern.permute.xlu0 0
        %2349 = vperm.xlu0 %2348, %v2211
        %v2350 = vpop.permute.xlu0 %2349
        %2353 = vset.pattern.permute.xlu0 0
        %2354 = vperm.xlu0 %2353, %v2212
        %v2355 = vpop.permute.xlu0 %2354
        %2358 = vset.pattern.permute.xlu0 0
        %2359 = vperm.xlu0 %2358, %v2213
        %v2360 = vpop.permute.xlu0 %2359
        %2363 = vset.pattern.permute.xlu0 0
        %2364 = vperm.xlu0 %2363, %v2214
        %v2365 = vpop.permute.xlu0 %2364
        %2368 = vset.pattern.permute.xlu0 0
        %2369 = vperm.xlu0 %2368, %v2215
        %v2370 = vpop.permute.xlu0 %2369
        %2373 = vset.pattern.permute.xlu0 0
        %2374 = vperm.xlu0 %2373, %v2216
        %v2375 = vpop.permute.xlu0 %2374
        %2378 = vset.pattern.permute.xlu0 0
        %2379 = vperm.xlu0 %2378, %v2217
        %v2380 = vpop.permute.xlu0 %2379
        %2383 = vset.pattern.permute.xlu0 0
        %2384 = vperm.xlu0 %2383, %v2218
        %v2385 = vpop.permute.xlu0 %2384
        %2388 = vset.pattern.permute.xlu0 0
        %2389 = vperm.xlu0 %2388, %v2219
        %v2390 = vpop.permute.xlu0 %2389
        %v2393 = vlaneseq
        %v2394 = vshrl.u32 %v2393, 7
        %v2395 = vsub.s32 0, %v2394
        %v2396 = vrot.slane %v2221, %v2395
        %v2398 = vmul.f32 %v2225, %v2396
        %v2399 = vmul.f32 %v2230, %v2396
        %v2400 = vmul.f32 %v2235, %v2396
        %v2401 = vmul.f32 %v2240, %v2396
        %v2402 = vmul.f32 %v2245, %v2396
        %v2403 = vmul.f32 %v2250, %v2396
        %v2404 = vmul.f32 %v2255, %v2396
        %v2405 = vmul.f32 %v2260, %v2396
        %v2406 = vmul.f32 %v2265, %v2396
        %v2407 = vmul.f32 %v2270, %v2396
        %v2408 = vmul.f32 %v2275, %v2396
        %v2409 = vmul.f32 %v2280, %v2396
        %v2410 = vmul.f32 %v2285, %v2396
        %v2411 = vmul.f32 %v2290, %v2396
        %v2412 = vmul.f32 %v2295, %v2396
        %v2413 = vmul.f32 %v2300, %v2396
        %v2414 = vmul.f32 %v2305, %v2396
        %v2415 = vmul.f32 %v2310, %v2396
        %v2416 = vmul.f32 %v2315, %v2396
        %v2417 = vmul.f32 %v2320, %v2396
        %v2418 = vmul.f32 %v2325, %v2396
        %v2419 = vmul.f32 %v2330, %v2396
        %v2420 = vmul.f32 %v2335, %v2396
        %v2421 = vmul.f32 %v2340, %v2396
        %v2422 = vmul.f32 %v2345, %v2396
        %v2423 = vmul.f32 %v2350, %v2396
        %v2424 = vmul.f32 %v2355, %v2396
        %v2425 = vmul.f32 %v2360, %v2396
        %v2426 = vmul.f32 %v2365, %v2396
        %v2427 = vmul.f32 %v2370, %v2396
        %v2428 = vmul.f32 %v2375, %v2396
        %v2429 = vmul.f32 %v2380, %v2396
        %v2430 = vmul.f32 %v2385, %v2396
        %v2431 = vmul.f32 %v2390, %v2396
        %v2432 = vadd.f32 %v2150, %v2398
        %v2433 = vadd.f32 %v2151, %v2399
        %v2434 = vadd.f32 %v2152, %v2400
        %v2435 = vadd.f32 %v2153, %v2401
        %v2436 = vadd.f32 %v2154, %v2402
        %v2437 = vadd.f32 %v2155, %v2403
        %v2438 = vadd.f32 %v2156, %v2404
        %v2439 = vadd.f32 %v2157, %v2405
        %v2440 = vadd.f32 %v2158, %v2406
        %v2441 = vadd.f32 %v2159, %v2407
        %v2442 = vadd.f32 %v2160, %v2408
        %v2443 = vadd.f32 %v2161, %v2409
        %v2444 = vadd.f32 %v2162, %v2410
        %v2445 = vadd.f32 %v2163, %v2411
        %v2446 = vadd.f32 %v2164, %v2412
        %v2447 = vadd.f32 %v2165, %v2413
        %v2448 = vadd.f32 %v2166, %v2414
        %v2449 = vadd.f32 %v2167, %v2415
        %v2450 = vadd.f32 %v2168, %v2416
        %v2451 = vadd.f32 %v2169, %v2417
        %v2452 = vadd.f32 %v2170, %v2418
        %v2453 = vadd.f32 %v2171, %v2419
        %v2454 = vadd.f32 %v2172, %v2420
        %v2455 = vadd.f32 %v2173, %v2421
        %v2456 = vadd.f32 %v2174, %v2422
        %v2457 = vadd.f32 %v2175, %v2423
        %v2458 = vadd.f32 %v2176, %v2424
        %v2459 = vadd.f32 %v2177, %v2425
        %v2460 = vadd.f32 %v2178, %v2426
        %v2461 = vadd.f32 %v2179, %v2427
        %v2462 = vadd.f32 %v2180, %v2428
        %v2463 = vadd.f32 %v2181, %v2429
        %v2464 = vadd.f32 %v2182, %v2430
        %v2465 = vadd.f32 %v2183, %v2431
        %s2466 = sadd.s32 %s211, 70
        %s2467 = scalar_lea.vmem %s209, %s2466
        %v2468 = vld [vmem:[%s2467] sm:$0xff]
        %v2469 = vld [vmem:[%s2467 + $0x8] sm:$0xff]
        %v2470 = vld [vmem:[%s2467 + $0x10] sm:$0xff]
        %v2471 = vld [vmem:[%s2467 + $0x18] sm:$0xff]
        %v2472 = vld [vmem:[%s2467 + $0x20] sm:$0xff]
        %v2473 = vld [vmem:[%s2467 + $0x28] sm:$0xff]
        %v2474 = vld [vmem:[%s2467 + $0x30] sm:$0xff]
        %v2475 = vld [vmem:[%s2467 + $0x38] sm:$0xff]
        %v2476 = vld [vmem:[%s2467 + $0x40] sm:$0xff]
        %v2477 = vld [vmem:[%s2467 + $0x48] sm:$0xff]
        %v2478 = vld [vmem:[%s2467 + $0x50] sm:$0xff]
        %v2479 = vld [vmem:[%s2467 + $0x58] sm:$0xff]
        %v2480 = vld [vmem:[%s2467 + $0x60] sm:$0xff]
        %v2481 = vld [vmem:[%s2467 + $0x68] sm:$0xff]
        %v2482 = vld [vmem:[%s2467 + $0x70] sm:$0xff]
        %v2483 = vld [vmem:[%s2467 + $0x78] sm:$0xff]
        %v2484 = vld [vmem:[%s2467 + $0x80] sm:$0xff]
        %v2485 = vld [vmem:[%s2467 + $0x88] sm:$0xff]
        %v2486 = vld [vmem:[%s2467 + $0x90] sm:$0xff]
        %v2487 = vld [vmem:[%s2467 + $0x98] sm:$0xff]
        %v2488 = vld [vmem:[%s2467 + $0xa0] sm:$0xff]
        %v2489 = vld [vmem:[%s2467 + $0xa8] sm:$0xff]
        %v2490 = vld [vmem:[%s2467 + $0xb0] sm:$0xff]
        %v2491 = vld [vmem:[%s2467 + $0xb8] sm:$0xff]
        %v2492 = vld [vmem:[%s2467 + $0xc0] sm:$0xff]
        %v2493 = vld [vmem:[%s2467 + $0xc8] sm:$0xff]
        %v2494 = vld [vmem:[%s2467 + $0xd0] sm:$0xff]
        %v2495 = vld [vmem:[%s2467 + $0xd8] sm:$0xff]
        %v2496 = vld [vmem:[%s2467 + $0xe0] sm:$0xff]
        %v2497 = vld [vmem:[%s2467 + $0xe8] sm:$0xff]
        %v2498 = vld [vmem:[%s2467 + $0xf0] sm:$0xff]
        %v2499 = vld [vmem:[%s2467 + $0xf8] sm:$0xff]
        %v2500 = vld [vmem:[%s2467 + $0x100] sm:$0xff]
        %v2501 = vld [vmem:[%s2467 + $0x108] sm:$0xff]
        %s2502 = scalar_lea.vmem %s1, 8
        %v2503 = vld [vmem:[%s2502] sm:$0x1]
        %2505 = vset.pattern.permute.xlu0 0
        %2506 = vperm.xlu0 %2505, %v2468
        %v2507 = vpop.permute.xlu0 %2506
        %2510 = vset.pattern.permute.xlu0 0
        %2511 = vperm.xlu0 %2510, %v2469
        %v2512 = vpop.permute.xlu0 %2511
        %2515 = vset.pattern.permute.xlu0 0
        %2516 = vperm.xlu0 %2515, %v2470
        %v2517 = vpop.permute.xlu0 %2516
        %2520 = vset.pattern.permute.xlu0 0
        %2521 = vperm.xlu0 %2520, %v2471
        %v2522 = vpop.permute.xlu0 %2521
        %2525 = vset.pattern.permute.xlu0 0
        %2526 = vperm.xlu0 %2525, %v2472
        %v2527 = vpop.permute.xlu0 %2526
        %2530 = vset.pattern.permute.xlu0 0
        %2531 = vperm.xlu0 %2530, %v2473
        %v2532 = vpop.permute.xlu0 %2531
        %2535 = vset.pattern.permute.xlu0 0
        %2536 = vperm.xlu0 %2535, %v2474
        %v2537 = vpop.permute.xlu0 %2536
        %2540 = vset.pattern.permute.xlu0 0
        %2541 = vperm.xlu0 %2540, %v2475
        %v2542 = vpop.permute.xlu0 %2541
        %2545 = vset.pattern.permute.xlu0 0
        %2546 = vperm.xlu0 %2545, %v2476
        %v2547 = vpop.permute.xlu0 %2546
        %2550 = vset.pattern.permute.xlu0 0
        %2551 = vperm.xlu0 %2550, %v2477
        %v2552 = vpop.permute.xlu0 %2551
        %2555 = vset.pattern.permute.xlu0 0
        %2556 = vperm.xlu0 %2555, %v2478
        %v2557 = vpop.permute.xlu0 %2556
        %2560 = vset.pattern.permute.xlu0 0
        %2561 = vperm.xlu0 %2560, %v2479
        %v2562 = vpop.permute.xlu0 %2561
        %2565 = vset.pattern.permute.xlu0 0
        %2566 = vperm.xlu0 %2565, %v2480
        %v2567 = vpop.permute.xlu0 %2566
        %2570 = vset.pattern.permute.xlu0 0
        %2571 = vperm.xlu0 %2570, %v2481
        %v2572 = vpop.permute.xlu0 %2571
        %2575 = vset.pattern.permute.xlu0 0
        %2576 = vperm.xlu0 %2575, %v2482
        %v2577 = vpop.permute.xlu0 %2576
        %2580 = vset.pattern.permute.xlu0 0
        %2581 = vperm.xlu0 %2580, %v2483
        %v2582 = vpop.permute.xlu0 %2581
        %2585 = vset.pattern.permute.xlu0 0
        %2586 = vperm.xlu0 %2585, %v2484
        %v2587 = vpop.permute.xlu0 %2586
        %2590 = vset.pattern.permute.xlu0 0
        %2591 = vperm.xlu0 %2590, %v2485
        %v2592 = vpop.permute.xlu0 %2591
        %2595 = vset.pattern.permute.xlu0 0
        %2596 = vperm.xlu0 %2595, %v2486
        %v2597 = vpop.permute.xlu0 %2596
        %2600 = vset.pattern.permute.xlu0 0
        %2601 = vperm.xlu0 %2600, %v2487
        %v2602 = vpop.permute.xlu0 %2601
        %2605 = vset.pattern.permute.xlu0 0
        %2606 = vperm.xlu0 %2605, %v2488
        %v2607 = vpop.permute.xlu0 %2606
        %2610 = vset.pattern.permute.xlu0 0
        %2611 = vperm.xlu0 %2610, %v2489
        %v2612 = vpop.permute.xlu0 %2611
        %2615 = vset.pattern.permute.xlu0 0
        %2616 = vperm.xlu0 %2615, %v2490
        %v2617 = vpop.permute.xlu0 %2616
        %2620 = vset.pattern.permute.xlu0 0
        %2621 = vperm.xlu0 %2620, %v2491
        %v2622 = vpop.permute.xlu0 %2621
        %2625 = vset.pattern.permute.xlu0 0
        %2626 = vperm.xlu0 %2625, %v2492
        %v2627 = vpop.permute.xlu0 %2626
        %2630 = vset.pattern.permute.xlu0 0
        %2631 = vperm.xlu0 %2630, %v2493
        %v2632 = vpop.permute.xlu0 %2631
        %2635 = vset.pattern.permute.xlu0 0
        %2636 = vperm.xlu0 %2635, %v2494
        %v2637 = vpop.permute.xlu0 %2636
        %2640 = vset.pattern.permute.xlu0 0
        %2641 = vperm.xlu0 %2640, %v2495
        %v2642 = vpop.permute.xlu0 %2641
        %2645 = vset.pattern.permute.xlu0 0
        %2646 = vperm.xlu0 %2645, %v2496
        %v2647 = vpop.permute.xlu0 %2646
        %2650 = vset.pattern.permute.xlu0 0
        %2651 = vperm.xlu0 %2650, %v2497
        %v2652 = vpop.permute.xlu0 %2651
        %2655 = vset.pattern.permute.xlu0 0
        %2656 = vperm.xlu0 %2655, %v2498
        %v2657 = vpop.permute.xlu0 %2656
        %2660 = vset.pattern.permute.xlu0 0
        %2661 = vperm.xlu0 %2660, %v2499
        %v2662 = vpop.permute.xlu0 %2661
        %2665 = vset.pattern.permute.xlu0 0
        %2666 = vperm.xlu0 %2665, %v2500
        %v2667 = vpop.permute.xlu0 %2666
        %2670 = vset.pattern.permute.xlu0 0
        %2671 = vperm.xlu0 %2670, %v2501
        %v2672 = vpop.permute.xlu0 %2671
        %v2675 = vlaneseq
        %v2676 = vshrl.u32 %v2675, 7
        %v2677 = vsub.s32 0, %v2676
        %v2678 = vrot.slane %v2503, %v2677
        %v2680 = vmul.f32 %v2507, %v2678
        %v2681 = vmul.f32 %v2512, %v2678
        %v2682 = vmul.f32 %v2517, %v2678
        %v2683 = vmul.f32 %v2522, %v2678
        %v2684 = vmul.f32 %v2527, %v2678
        %v2685 = vmul.f32 %v2532, %v2678
        %v2686 = vmul.f32 %v2537, %v2678
        %v2687 = vmul.f32 %v2542, %v2678
        %v2688 = vmul.f32 %v2547, %v2678
        %v2689 = vmul.f32 %v2552, %v2678
        %v2690 = vmul.f32 %v2557, %v2678
        %v2691 = vmul.f32 %v2562, %v2678
        %v2692 = vmul.f32 %v2567, %v2678
        %v2693 = vmul.f32 %v2572, %v2678
        %v2694 = vmul.f32 %v2577, %v2678
        %v2695 = vmul.f32 %v2582, %v2678
        %v2696 = vmul.f32 %v2587, %v2678
        %v2697 = vmul.f32 %v2592, %v2678
        %v2698 = vmul.f32 %v2597, %v2678
        %v2699 = vmul.f32 %v2602, %v2678
        %v2700 = vmul.f32 %v2607, %v2678
        %v2701 = vmul.f32 %v2612, %v2678
        %v2702 = vmul.f32 %v2617, %v2678
        %v2703 = vmul.f32 %v2622, %v2678
        %v2704 = vmul.f32 %v2627, %v2678
        %v2705 = vmul.f32 %v2632, %v2678
        %v2706 = vmul.f32 %v2637, %v2678
        %v2707 = vmul.f32 %v2642, %v2678
        %v2708 = vmul.f32 %v2647, %v2678
        %v2709 = vmul.f32 %v2652, %v2678
        %v2710 = vmul.f32 %v2657, %v2678
        %v2711 = vmul.f32 %v2662, %v2678
        %v2712 = vmul.f32 %v2667, %v2678
        %v2713 = vmul.f32 %v2672, %v2678
        %v2714 = vadd.f32 %v2432, %v2680
        %v2715 = vadd.f32 %v2433, %v2681
        %v2716 = vadd.f32 %v2434, %v2682
        %v2717 = vadd.f32 %v2435, %v2683
        %v2718 = vadd.f32 %v2436, %v2684
        %v2719 = vadd.f32 %v2437, %v2685
        %v2720 = vadd.f32 %v2438, %v2686
        %v2721 = vadd.f32 %v2439, %v2687
        %v2722 = vadd.f32 %v2440, %v2688
        %v2723 = vadd.f32 %v2441, %v2689
        %v2724 = vadd.f32 %v2442, %v2690
        %v2725 = vadd.f32 %v2443, %v2691
        %v2726 = vadd.f32 %v2444, %v2692
        %v2727 = vadd.f32 %v2445, %v2693
        %v2728 = vadd.f32 %v2446, %v2694
        %v2729 = vadd.f32 %v2447, %v2695
        %v2730 = vadd.f32 %v2448, %v2696
        %v2731 = vadd.f32 %v2449, %v2697
        %v2732 = vadd.f32 %v2450, %v2698
        %v2733 = vadd.f32 %v2451, %v2699
        %v2734 = vadd.f32 %v2452, %v2700
        %v2735 = vadd.f32 %v2453, %v2701
        %v2736 = vadd.f32 %v2454, %v2702
        %v2737 = vadd.f32 %v2455, %v2703
        %v2738 = vadd.f32 %v2456, %v2704
        %v2739 = vadd.f32 %v2457, %v2705
        %v2740 = vadd.f32 %v2458, %v2706
        %v2741 = vadd.f32 %v2459, %v2707
        %v2742 = vadd.f32 %v2460, %v2708
        %v2743 = vadd.f32 %v2461, %v2709
        %v2744 = vadd.f32 %v2462, %v2710
        %v2745 = vadd.f32 %v2463, %v2711
        %v2746 = vadd.f32 %v2464, %v2712
        %v2747 = vadd.f32 %v2465, %v2713
        %vm2748 = vcmask 523264
        %2749 = vst.msk [vmem:[#allocation2] sm:$0xff] %vm2748, %v2714
        %2750 = vst.msk [vmem:[#allocation2 + $0x8] sm:$0xff] %vm2748, %v2715
        %2751 = vst.msk [vmem:[#allocation2 + $0x10] sm:$0xff] %vm2748, %v2716
        %2752 = vst.msk [vmem:[#allocation2 + $0x18] sm:$0xff] %vm2748, %v2717
        %2753 = vst.msk [vmem:[#allocation2 + $0x20] sm:$0xff] %vm2748, %v2718
        %2754 = vst.msk [vmem:[#allocation2 + $0x28] sm:$0xff] %vm2748, %v2719
        %2755 = vst.msk [vmem:[#allocation2 + $0x30] sm:$0xff] %vm2748, %v2720
        %2756 = vst.msk [vmem:[#allocation2 + $0x38] sm:$0xff] %vm2748, %v2721
        %2757 = vst.msk [vmem:[#allocation2 + $0x40] sm:$0xff] %vm2748, %v2722
        %2758 = vst.msk [vmem:[#allocation2 + $0x48] sm:$0xff] %vm2748, %v2723
        %2759 = vst.msk [vmem:[#allocation2 + $0x50] sm:$0xff] %vm2748, %v2724
        %2760 = vst.msk [vmem:[#allocation2 + $0x58] sm:$0xff] %vm2748, %v2725
        %2761 = vst.msk [vmem:[#allocation2 + $0x60] sm:$0xff] %vm2748, %v2726
        %2762 = vst.msk [vmem:[#allocation2 + $0x68] sm:$0xff] %vm2748, %v2727
        %2763 = vst.msk [vmem:[#allocation2 + $0x70] sm:$0xff] %vm2748, %v2728
        %2764 = vst.msk [vmem:[#allocation2 + $0x78] sm:$0xff] %vm2748, %v2729
        %2765 = vst.msk [vmem:[#allocation2 + $0x80] sm:$0xff] %vm2748, %v2730
        %2766 = vst.msk [vmem:[#allocation2 + $0x88] sm:$0xff] %vm2748, %v2731
        %2767 = vst.msk [vmem:[#allocation2 + $0x90] sm:$0xff] %vm2748, %v2732
        %2768 = vst.msk [vmem:[#allocation2 + $0x98] sm:$0xff] %vm2748, %v2733
        %2769 = vst.msk [vmem:[#allocation2 + $0xa0] sm:$0xff] %vm2748, %v2734
        %2770 = vst.msk [vmem:[#allocation2 + $0xa8] sm:$0xff] %vm2748, %v2735
        %2771 = vst.msk [vmem:[#allocation2 + $0xb0] sm:$0xff] %vm2748, %v2736
        %2772 = vst.msk [vmem:[#allocation2 + $0xb8] sm:$0xff] %vm2748, %v2737
        %2773 = vst.msk [vmem:[#allocation2 + $0xc0] sm:$0xff] %vm2748, %v2738
        %2774 = vst.msk [vmem:[#allocation2 + $0xc8] sm:$0xff] %vm2748, %v2739
        %2775 = vst.msk [vmem:[#allocation2 + $0xd0] sm:$0xff] %vm2748, %v2740
        %2776 = vst.msk [vmem:[#allocation2 + $0xd8] sm:$0xff] %vm2748, %v2741
        %2777 = vst.msk [vmem:[#allocation2 + $0xe0] sm:$0xff] %vm2748, %v2742
        %2778 = vst.msk [vmem:[#allocation2 + $0xe8] sm:$0xff] %vm2748, %v2743
        %2779 = vst.msk [vmem:[#allocation2 + $0xf0] sm:$0xff] %vm2748, %v2744
        %2780 = vst.msk [vmem:[#allocation2 + $0xf8] sm:$0xff] %vm2748, %v2745
        %2781 = vst.msk [vmem:[#allocation2 + $0x100] sm:$0xff] %vm2748, %v2746
        %2782 = vst.msk [vmem:[#allocation2 + $0x108] sm:$0xff] %vm2748, %v2747
        %v2783 = vld [vmem:[%s2] sm:$0x1]
        %v2784 = vld [vmem:[%s3] sm:$0x1]
        %v2785 = vld [vmem:[#allocation2] sm:$0xff]
        %v2786 = vld [vmem:[#allocation2 + $0x8] sm:$0xff]
        %v2787 = vld [vmem:[#allocation2 + $0x10] sm:$0xff]
        %v2788 = vld [vmem:[#allocation2 + $0x18] sm:$0xff]
        %v2790 = vlaneseq
        %v2791 = vshrl.u32 %v2790, 7
        %v2792 = vsub.s32 0, %v2791
        %v2793 = vrot.slane %v2783, %v2792
        %v2795 = vmul.f32 %v2785, %v2793
        %v2796 = vmul.f32 %v2786, %v2793
        %v2797 = vmul.f32 %v2787, %v2793
        %v2798 = vmul.f32 %v2788, %v2793
        %v2800 = vlaneseq
        %v2801 = vshrl.u32 %v2800, 7
        %v2802 = vsub.s32 0, %v2801
        %v2803 = vrot.slane %v2784, %v2802
        %v2805 = vadd.f32 %v2795, %v2803
        %v2806 = vadd.f32 %v2796, %v2803
        %v2807 = vadd.f32 %v2797, %v2803
        %v2808 = vadd.f32 %v2798, %v2803
        %v2809 = vmax.f32 %v2805, 0.0
        %v2810 = vmax.f32 %v2806, 0.0
        %v2811 = vmax.f32 %v2807, 0.0
        %v2812 = vmax.f32 %v2808, 0.0
        %v2813 = vpack.c.bf16 %v2810, %v2809
        %v2814 = vpack.c.bf16 %v2812, %v2811
        %v2817 = vunpack.c.l.b16 %v2813
        %v2818 = vunpack.c.h.b16 %v2813
        %v2819 = vunpack.c.l.b16 %v2814
        %v2820 = vunpack.c.h.b16 %v2814
        %v2821 = vpack.c.b16 %v2817, %v2817
        %v2822 = vpack.c.b16 %v2818, %v2818
        %v2823 = vpack.c.b16 %v2819, %v2819
        %v2824 = vpack.c.b16 %v2820, %v2820
        %vm2829 = vcmask 519168
        %2830 = vst.msk [vmem:[%s204] sm:$0xf] %vm2829, %v2821
        %2831 = vst.msk [vmem:[%s204 + $0x4] sm:$0xf] %vm2829, %v2822
        %2832 = vst.msk [vmem:[%s204 + $0x8] sm:$0xf] %vm2829, %v2823
        %2833 = vst.msk [vmem:[%s204 + $0xc] sm:$0xf] %vm2829, %v2824
        %v2834 = vld [vmem:[#allocation2 + $0x22] sm:$0xff]
        %v2835 = vld [vmem:[#allocation2 + $0x2a] sm:$0xff]
        %v2836 = vld [vmem:[#allocation2 + $0x32] sm:$0xff]
        %v2837 = vld [vmem:[#allocation2 + $0x3a] sm:$0xff]
        %v2838 = vmul.f32 %v2834, %v2793
        %v2839 = vmul.f32 %v2835, %v2793
        %v2840 = vmul.f32 %v2836, %v2793
        %v2841 = vmul.f32 %v2837, %v2793
        %v2842 = vadd.f32 %v2838, %v2803
        %v2843 = vadd.f32 %v2839, %v2803
        %v2844 = vadd.f32 %v2840, %v2803
        %v2845 = vadd.f32 %v2841, %v2803
        %v2846 = vmax.f32 %v2842, 0.0
        %v2847 = vmax.f32 %v2843, 0.0
        %v2848 = vmax.f32 %v2844, 0.0
        %v2849 = vmax.f32 %v2845, 0.0
        %v2850 = vpack.c.bf16 %v2847, %v2846
        %v2851 = vpack.c.bf16 %v2849, %v2848
        %v2854 = vunpack.c.l.b16 %v2850
        %v2855 = vunpack.c.h.b16 %v2850
        %v2856 = vunpack.c.l.b16 %v2851
        %v2857 = vunpack.c.h.b16 %v2851
        %v2858 = vpack.c.b16 %v2854, %v2854
        %v2859 = vpack.c.b16 %v2855, %v2855
        %v2860 = vpack.c.b16 %v2856, %v2856
        %v2861 = vpack.c.b16 %v2857, %v2857
        %s2866 = scalar_lea.vmem %s204, 16 [#allocation3]
        %2867 = vst.msk [vmem:[%s2866] sm:$0xf] %vm2829, %v2858
        %2868 = vst.msk [vmem:[%s2866 + $0x4] sm:$0xf] %vm2829, %v2859
        %2869 = vst.msk [vmem:[%s2866 + $0x8] sm:$0xf] %vm2829, %v2860
        %2870 = vst.msk [vmem:[%s2866 + $0xc] sm:$0xf] %vm2829, %v2861
        %v2871 = vld [vmem:[#allocation2 + $0x44] sm:$0xff]
        %v2872 = vld [vmem:[#allocation2 + $0x4c] sm:$0xff]
        %v2873 = vld [vmem:[#allocation2 + $0x54] sm:$0xff]
        %v2874 = vld [vmem:[#allocation2 + $0x5c] sm:$0xff]
        %v2875 = vmul.f32 %v2871, %v2793
        %v2876 = vmul.f32 %v2872, %v2793
        %v2877 = vmul.f32 %v2873, %v2793
        %v2878 = vmul.f32 %v2874, %v2793
        %v2879 = vadd.f32 %v2875, %v2803
        %v2880 = vadd.f32 %v2876, %v2803
        %v2881 = vadd.f32 %v2877, %v2803
        %v2882 = vadd.f32 %v2878, %v2803
        %v2883 = vmax.f32 %v2879, 0.0
        %v2884 = vmax.f32 %v2880, 0.0
        %v2885 = vmax.f32 %v2881, 0.0
        %v2886 = vmax.f32 %v2882, 0.0
        %v2887 = vpack.c.bf16 %v2884, %v2883
        %v2888 = vpack.c.bf16 %v2886, %v2885
        %v2891 = vunpack.c.l.b16 %v2887
        %v2892 = vunpack.c.h.b16 %v2887
        %v2893 = vunpack.c.l.b16 %v2888
        %v2894 = vunpack.c.h.b16 %v2888
        %v2895 = vpack.c.b16 %v2891, %v2891
        %v2896 = vpack.c.b16 %v2892, %v2892
        %v2897 = vpack.c.b16 %v2893, %v2893
        %v2898 = vpack.c.b16 %v2894, %v2894
        %s2903 = scalar_lea.vmem %s204, 32 [#allocation3]
        %2904 = vst.msk [vmem:[%s2903] sm:$0xf] %vm2829, %v2895
        %2905 = vst.msk [vmem:[%s2903 + $0x4] sm:$0xf] %vm2829, %v2896
        %2906 = vst.msk [vmem:[%s2903 + $0x8] sm:$0xf] %vm2829, %v2897
        %2907 = vst.msk [vmem:[%s2903 + $0xc] sm:$0xf] %vm2829, %v2898
        %v2908 = vld [vmem:[#allocation2 + $0x66] sm:$0xff]
        %v2909 = vld [vmem:[#allocation2 + $0x6e] sm:$0xff]
        %v2910 = vld [vmem:[#allocation2 + $0x76] sm:$0xff]
        %v2911 = vld [vmem:[#allocation2 + $0x7e] sm:$0xff]
        %v2912 = vmul.f32 %v2908, %v2793
        %v2913 = vmul.f32 %v2909, %v2793
        %v2914 = vmul.f32 %v2910, %v2793
        %v2915 = vmul.f32 %v2911, %v2793
        %v2916 = vadd.f32 %v2912, %v2803
        %v2917 = vadd.f32 %v2913, %v2803
        %v2918 = vadd.f32 %v2914, %v2803
        %v2919 = vadd.f32 %v2915, %v2803
        %v2920 = vmax.f32 %v2916, 0.0
        %v2921 = vmax.f32 %v2917, 0.0
        %v2922 = vmax.f32 %v2918, 0.0
        %v2923 = vmax.f32 %v2919, 0.0
        %v2924 = vpack.c.bf16 %v2921, %v2920
        %v2925 = vpack.c.bf16 %v2923, %v2922
        %v2928 = vunpack.c.l.b16 %v2924
        %v2929 = vunpack.c.h.b16 %v2924
        %v2930 = vunpack.c.l.b16 %v2925
        %v2931 = vunpack.c.h.b16 %v2925
        %v2932 = vpack.c.b16 %v2928, %v2928
        %v2933 = vpack.c.b16 %v2929, %v2929
        %v2934 = vpack.c.b16 %v2930, %v2930
        %v2935 = vpack.c.b16 %v2931, %v2931
        %s2940 = scalar_lea.vmem %s204, 48 [#allocation3]
        %2941 = vst.msk [vmem:[%s2940] sm:$0xf] %vm2829, %v2932
        %2942 = vst.msk [vmem:[%s2940 + $0x4] sm:$0xf] %vm2829, %v2933
        %2943 = vst.msk [vmem:[%s2940 + $0x8] sm:$0xf] %vm2829, %v2934
        %2944 = vst.msk [vmem:[%s2940 + $0xc] sm:$0xf] %vm2829, %v2935
        %v2945 = vld [vmem:[#allocation2 + $0x88] sm:$0xff]
        %v2946 = vld [vmem:[#allocation2 + $0x90] sm:$0xff]
        %v2947 = vld [vmem:[#allocation2 + $0x98] sm:$0xff]
        %v2948 = vld [vmem:[#allocation2 + $0xa0] sm:$0xff]
        %v2949 = vmul.f32 %v2945, %v2793
        %v2950 = vmul.f32 %v2946, %v2793
        %v2951 = vmul.f32 %v2947, %v2793
        %v2952 = vmul.f32 %v2948, %v2793
        %v2953 = vadd.f32 %v2949, %v2803
        %v2954 = vadd.f32 %v2950, %v2803
        %v2955 = vadd.f32 %v2951, %v2803
        %v2956 = vadd.f32 %v2952, %v2803
        %v2957 = vmax.f32 %v2953, 0.0
        %v2958 = vmax.f32 %v2954, 0.0
        %v2959 = vmax.f32 %v2955, 0.0
        %v2960 = vmax.f32 %v2956, 0.0
        %v2961 = vpack.c.bf16 %v2958, %v2957
        %v2962 = vpack.c.bf16 %v2960, %v2959
        %v2965 = vunpack.c.l.b16 %v2961
        %v2966 = vunpack.c.h.b16 %v2961
        %v2967 = vunpack.c.l.b16 %v2962
        %v2968 = vunpack.c.h.b16 %v2962
        %v2969 = vpack.c.b16 %v2965, %v2965
        %v2970 = vpack.c.b16 %v2966, %v2966
        %v2971 = vpack.c.b16 %v2967, %v2967
        %v2972 = vpack.c.b16 %v2968, %v2968
        %s2977 = scalar_lea.vmem %s204, 64 [#allocation3]
        %2978 = vst.msk [vmem:[%s2977] sm:$0xf] %vm2829, %v2969
        %2979 = vst.msk [vmem:[%s2977 + $0x4] sm:$0xf] %vm2829, %v2970
        %2980 = vst.msk [vmem:[%s2977 + $0x8] sm:$0xf] %vm2829, %v2971
        %2981 = vst.msk [vmem:[%s2977 + $0xc] sm:$0xf] %vm2829, %v2972
        %v2982 = vld [vmem:[#allocation2 + $0xaa] sm:$0xff]
        %v2983 = vld [vmem:[#allocation2 + $0xb2] sm:$0xff]
        %v2984 = vld [vmem:[#allocation2 + $0xba] sm:$0xff]
        %v2985 = vld [vmem:[#allocation2 + $0xc2] sm:$0xff]
        %v2986 = vmul.f32 %v2982, %v2793
        %v2987 = vmul.f32 %v2983, %v2793
        %v2988 = vmul.f32 %v2984, %v2793
        %v2989 = vmul.f32 %v2985, %v2793
        %v2990 = vadd.f32 %v2986, %v2803
        %v2991 = vadd.f32 %v2987, %v2803
        %v2992 = vadd.f32 %v2988, %v2803
        %v2993 = vadd.f32 %v2989, %v2803
        %v2994 = vmax.f32 %v2990, 0.0
        %v2995 = vmax.f32 %v2991, 0.0
        %v2996 = vmax.f32 %v2992, 0.0
        %v2997 = vmax.f32 %v2993, 0.0
        %v2998 = vpack.c.bf16 %v2995, %v2994
        %v2999 = vpack.c.bf16 %v2997, %v2996
        %v3002 = vunpack.c.l.b16 %v2998
        %v3003 = vunpack.c.h.b16 %v2998
        %v3004 = vunpack.c.l.b16 %v2999
        %v3005 = vunpack.c.h.b16 %v2999
        %v3006 = vpack.c.b16 %v3002, %v3002
        %v3007 = vpack.c.b16 %v3003, %v3003
        %v3008 = vpack.c.b16 %v3004, %v3004
        %v3009 = vpack.c.b16 %v3005, %v3005
        %s3014 = scalar_lea.vmem %s204, 80 [#allocation3]
        %3015 = vst.msk [vmem:[%s3014] sm:$0xf] %vm2829, %v3006
        %3016 = vst.msk [vmem:[%s3014 + $0x4] sm:$0xf] %vm2829, %v3007
        %3017 = vst.msk [vmem:[%s3014 + $0x8] sm:$0xf] %vm2829, %v3008
        %3018 = vst.msk [vmem:[%s3014 + $0xc] sm:$0xf] %vm2829, %v3009
        %v3019 = vld [vmem:[#allocation2 + $0xcc] sm:$0xff]
        %v3020 = vld [vmem:[#allocation2 + $0xd4] sm:$0xff]
        %v3021 = vld [vmem:[#allocation2 + $0xdc] sm:$0xff]
        %v3022 = vld [vmem:[#allocation2 + $0xe4] sm:$0xff]
        %v3023 = vmul.f32 %v3019, %v2793
        %v3024 = vmul.f32 %v3020, %v2793
        %v3025 = vmul.f32 %v3021, %v2793
        %v3026 = vmul.f32 %v3022, %v2793
        %v3027 = vadd.f32 %v3023, %v2803
        %v3028 = vadd.f32 %v3024, %v2803
        %v3029 = vadd.f32 %v3025, %v2803
        %v3030 = vadd.f32 %v3026, %v2803
        %v3031 = vmax.f32 %v3027, 0.0
        %v3032 = vmax.f32 %v3028, 0.0
        %v3033 = vmax.f32 %v3029, 0.0
        %v3034 = vmax.f32 %v3030, 0.0
        %v3035 = vpack.c.bf16 %v3032, %v3031
        %v3036 = vpack.c.bf16 %v3034, %v3033
        %v3039 = vunpack.c.l.b16 %v3035
        %v3040 = vunpack.c.h.b16 %v3035
        %v3041 = vunpack.c.l.b16 %v3036
        %v3042 = vunpack.c.h.b16 %v3036
        %v3043 = vpack.c.b16 %v3039, %v3039
        %v3044 = vpack.c.b16 %v3040, %v3040
        %v3045 = vpack.c.b16 %v3041, %v3041
        %v3046 = vpack.c.b16 %v3042, %v3042
        %s3051 = scalar_lea.vmem %s204, 96 [#allocation3]
        %3052 = vst.msk [vmem:[%s3051] sm:$0xf] %vm2829, %v3043
        %3053 = vst.msk [vmem:[%s3051 + $0x4] sm:$0xf] %vm2829, %v3044
        %3054 = vst.msk [vmem:[%s3051 + $0x8] sm:$0xf] %vm2829, %v3045
        %3055 = vst.msk [vmem:[%s3051 + $0xc] sm:$0xf] %vm2829, %v3046
        %v3056 = vld [vmem:[#allocation2 + $0xee] sm:$0xff]
        %v3057 = vld [vmem:[#allocation2 + $0xf6] sm:$0xff]
        %v3058 = vld [vmem:[#allocation2 + $0xfe] sm:$0xff]
        %v3059 = vld [vmem:[#allocation2 + $0x106] sm:$0xff]
        %v3060 = vmul.f32 %v3056, %v2793
        %v3061 = vmul.f32 %v3057, %v2793
        %v3062 = vmul.f32 %v3058, %v2793
        %v3063 = vmul.f32 %v3059, %v2793
        %v3064 = vadd.f32 %v3060, %v2803
        %v3065 = vadd.f32 %v3061, %v2803
        %v3066 = vadd.f32 %v3062, %v2803
        %v3067 = vadd.f32 %v3063, %v2803
        %v3068 = vmax.f32 %v3064, 0.0
        %v3069 = vmax.f32 %v3065, 0.0
        %v3070 = vmax.f32 %v3066, 0.0
        %v3071 = vmax.f32 %v3067, 0.0
        %v3072 = vpack.c.bf16 %v3069, %v3068
        %v3073 = vpack.c.bf16 %v3071, %v3070
        %v3076 = vunpack.c.l.b16 %v3072
        %v3077 = vunpack.c.h.b16 %v3072
        %v3078 = vunpack.c.l.b16 %v3073
        %v3079 = vunpack.c.h.b16 %v3073
        %v3080 = vpack.c.b16 %v3076, %v3076
        %v3081 = vpack.c.b16 %v3077, %v3077
        %v3082 = vpack.c.b16 %v3078, %v3078
        %v3083 = vpack.c.b16 %v3079, %v3079
        %s3088 = scalar_lea.vmem %s204, 112 [#allocation3]
        %3089 = vst.msk [vmem:[%s3088] sm:$0xf] %vm2829, %v3080
        %3090 = vst.msk [vmem:[%s3088 + $0x4] sm:$0xf] %vm2829, %v3081
        %3091 = vst.msk [vmem:[%s3088 + $0x8] sm:$0xf] %vm2829, %v3082
        %3092 = vst.msk [vmem:[%s3088 + $0xc] sm:$0xf] %vm2829, %v3083
        %s3093 = sand.u32 %s129, 1
        %s3094 = scalar_lea.sflag [#allocation4], %s3093
        %s3095 = sand.u32 %s129, 1
        %s3096 = smul.addr %s3095, 128
        %s3097 = scalar_lea.vmem [#allocation3], %s3096
        // Predicated region
        $region37: #{tpu_custom_call.1} parent=35 // pred_check
          %p3098 = pneg %p139
        $region38: #{tpu_custom_call.1} parent=35 // pred_check_branch
          %3100 = sbr.rel (%p3098) target = $region40
        $region39: #{tpu_custom_call.1} parent=35 // pred_region
          %s3101 = smul.u32 8, %s23
          %s3103 = ssub.s32 2048, 2048
          %3104 = vsyncadd %s3094, %s3103
          %s3105 = smul.addr %s3101, 4
          %s3106 = smul.addr %s22, 128
          %s3107 = sadd.s32 %s3105, %s3106
          %s3108 = smul.addr %s3107, 64
          %s3109 = scalar_lea.hbm %s4, %s3108
          %s3110 = sshll.u32 %s3097, 4
          %s3111 = int_to_ptr.vmem [resolvable:$true] %s3110
          %3116 = dma.vmem_to_hbm [thread:$0]  %s3111, 2048, %s3109, %s3094, 64, 64, 4
        $region40: #{tpu_custom_call.1} parent=35 // pred_fallthru
          _
      $region36: #{tpu_custom_call.1} parent=5 // pred_fallthru
        _
      %p3117 = scmp.le.s32.totalorder 2, %s13
      // Predicated region
      $region41: #{tpu_custom_call.1} parent=5 // pred_check
        %p3118 = pneg %p3117
      $region42: #{tpu_custom_call.1} parent=5 // pred_check_branch
        %3120 = sbr.rel (%p3118) target = $region44
      $region43: #{tpu_custom_call.1} parent=5 // pred_region
        %s3121 = ssub.s32 %s13, 2
        // Predicated region
        $region45: #{tpu_custom_call.1} parent=43 // pred_check
          %p3122 = pneg %p145
        $region46: #{tpu_custom_call.1} parent=43 // pred_check_branch
          %3124 = sbr.rel (%p3122) target = $region48
        $region47: #{tpu_custom_call.1} parent=43 // pred_region
          %s3125 = sand.u32 %s130, 1
          %s3126 = scalar_lea.sflag [#allocation4], %s3125
          %s3127 = sand.u32 %s130, 1
          %s3128 = smul.addr %s3127, 128
          %s3129 = scalar_lea.vmem [#allocation3], %s3128
          %3130 = dma.done %s3126, 2048
        $region48: #{tpu_custom_call.1} parent=43 // pred_fallthru
          _
      $region44: #{tpu_custom_call.1} parent=5 // pred_fallthru
        _
    $region6: #{tpu_custom_call.1} parent=1 // loop_footer
      %s17 = sadd.s32 1, %s13
    $region7: #{tpu_custom_call.1} parent=1 // loop_footer_branch
      %12 = sbr.rel target = $region3
    $region8: #{tpu_custom_call.1} parent=1 // loop_exit
      _
    %3131 = vsyncpa [#allocation4], 1
    %s3132 = scalar_lea.sflag [#allocation4], 1
    %3133 = vsyncpa %s3132, 1

</llo_original>
